<compile_context>
chip_gen: v7x
topology: tpu7x:2x2x1
jax: 0.10.0
libtpu: 0.0.40
codegen_flags: <defaults>
</compile_context>

<pallas_src>
import jax
import jax.numpy as jnp
from jax.experimental import pallas as pl
from jax.experimental.pallas import tpu as pltpu


K_DIM = 784   # contraction dim of fc1 (no zero padding; Mosaic masks lanes)
H_DIM = 256   # fc1 output features
N_PAD = 128   # fc2 output padded from 10 to one full vreg lane width


def fast_mnist_kernel(x_ref, w1_ref, b1_ref, w2_ref, b2_ref, o_ref):
    # Cast activations to bf16 in-kernel (no extra XLA pad/cast pass in HBM).
    x = x_ref[...].astype(jnp.bfloat16)
    # fc1 on the MXU: (TB, 784) @ (784, 256), f32 accumulation.
    h = jnp.dot(x, w1_ref[...], preferred_element_type=jnp.float32)
    # Bias add + ReLU in f32 on the VPU.
    h = jnp.maximum(h + b1_ref[...], 0.0)
    # fc2 on the MXU with a lane-dense 128-wide output: (TB, 256) @ (256, 128).
    out = jnp.dot(h.astype(jnp.bfloat16), w2_ref[...],
                  preferred_element_type=jnp.float32)
    # bf16 writeback (output lanes 10..127 are exact zeros from the zero-pad).
    o_ref[...] = (out + b2_ref[...]).astype(o_ref.dtype)


def _round_up(x, m):
    return ((x + m - 1) // m) * m


def fast_mnist_forward(x, w1, b1, w2, b2, *, tb=2048):
    """Forward pass of FastMNIST.

    x : any shape whose trailing dims flatten to 784 (e.g. (B, 1, 28, 28)),
        f32 or bf16.
    w1: (784, 256)  b1: (256,)   [nn.Linear fc1, weight transposed]
    w2: (256, 10)   b2: (10,)    [nn.Linear fc2, weight transposed]
    Returns (B, 10) float32 logits.
    """
    x2d = x.reshape(-1, K_DIM)
    B = x2d.shape[0]

    # Batch tile: multiple of 128 (MXU rows), capped at `tb`, and chosen so
    # the batch grid has >= 2 steps when B permits (v7x has 2 TensorCores).
    TB = min(tb, max(128, _round_up((B + 1) // 2, 128)))
    Bp = _round_up(B, TB)
    if Bp != B:
        # Only pad when the batch isn't already tile-aligned (rare for
        # training-sized batches); no dtype conversion happens here.
        x2d = jnp.pad(x2d, ((0, Bp - B), (0, 0)))

    # Weights/biases: tiny one-time casts / pads (fc2 padded to 128 lanes).
    w1b = w1.astype(jnp.bfloat16)                                   # (784, 256)
    b1f = b1.reshape(1, H_DIM).astype(jnp.float32)                  # (1, 256)
    w2b = jnp.zeros((H_DIM, N_PAD), jnp.bfloat16).at[:, :10].set(
        w2.astype(jnp.bfloat16))                                    # (256, 128)
    b2f = jnp.zeros((1, N_PAD), jnp.float32).at[:, :10].set(
        b2.reshape(1, 10).astype(jnp.float32))                      # (1, 128)

    grid = (Bp // TB,)

    # VMEM budget sized from the actual buffers (+ headroom), not a blanket
    # number: x/out are double-buffered by the pipeline, weights are small.
    x_itemsize = jnp.dtype(x2d.dtype).itemsize
    vmem_need = (
        2 * TB * K_DIM * x_itemsize          # x tiles (double-buffered)
        + 2 * TB * N_PAD * 2                 # bf16 out tiles (double-buffered)
        + 2 * (K_DIM * H_DIM * 2 + H_DIM * 4)    # w1 + b1 (default 2 buffers)
        + 2 * (H_DIM * N_PAD * 2 + N_PAD * 4)    # w2 + b2 (default 2 buffers)
        + TB * H_DIM * 4 + TB * N_PAD * 4)   # f32 intermediates h / out
    vmem_limit = int(vmem_need * 1.3) + (8 << 20)

    flops = 2 * Bp * (K_DIM * H_DIM + H_DIM * N_PAD)
    bytes_accessed = (Bp * K_DIM * x_itemsize + w1b.size * 2 + w2b.size * 2
                      + b1f.size * 4 + b2f.size * 4 + Bp * N_PAD * 2)

    out_padded = pl.pallas_call(
        fast_mnist_kernel,
        out_shape=jax.ShapeDtypeStruct((Bp, N_PAD), jnp.bfloat16),
        grid=grid,
        in_specs=[
            # x: tiled over the batch axis only; full-extent 784 last dim.
            pl.BlockSpec((TB, K_DIM), lambda i: (i, 0)),
            # Weights / biases: same block every step -> stay VMEM-resident.
            # (pipeline_mode=pl.Buffered(1) would save ~1 MiB of VMEM here;
            #  left at the default double-buffering for maximum portability.)
            pl.BlockSpec((K_DIM, H_DIM), lambda i: (0, 0)),
            pl.BlockSpec((1, H_DIM), lambda i: (0, 0)),
            pl.BlockSpec((H_DIM, N_PAD), lambda i: (0, 0)),
            pl.BlockSpec((1, N_PAD), lambda i: (0, 0)),
        ],
        out_specs=pl.BlockSpec((TB, N_PAD), lambda i: (i, 0)),
        compiler_params=pltpu.CompilerParams(
            dimension_semantics=("parallel",),   # batch tiles are independent
            vmem_limit_bytes=vmem_limit,
        ),
        cost_estimate=pl.CostEstimate(
            flops=flops, transcendentals=0, bytes_accessed=bytes_accessed),
    )(x2d, w1b, b1f, w2b, b2f)

    # Drop batch padding and the padded output lanes; return f32 logits.
    # (Downstream code that tolerates bf16 / padded outputs can skip this.)
    return out_padded[:B, :10].astype(jnp.float32)


def init_params(key):
    """Deterministic init matching nn.Linear defaults (weights transposed)."""
    k1, k2, k3, k4 = jax.random.split(key, 4)
    lim1 = 1.0 / jnp.sqrt(784.0)
    lim2 = 1.0 / jnp.sqrt(256.0)
    w1 = jax.random.uniform(k1, (784, 256), jnp.float32, -lim1, lim1)
    b1 = jax.random.uniform(k2, (256,), jnp.float32, -lim1, lim1)
    w2 = jax.random.uniform(k3, (256, 10), jnp.float32, -lim2, lim2)
    b2 = jax.random.uniform(k4, (10,), jnp.float32, -lim2, lim2)
    return w1, b1, w2, b2


if __name__ == "__main__":
    key = jax.random.PRNGKey(0)
    k_x, k_p = jax.random.split(key)

    # Small MNIST-like batch: (B, 1, 28, 28) NCHW -> flattens to (B, 784).
    B = 4
    x = jax.random.normal(k_x, (B, 1, 28, 28), jnp.float32)
    w1, b1, w2, b2 = init_params(k_p)

    out = fast_mnist_forward(x, w1, b1, w2, b2)
    out = jax.block_until_ready(out)

    # Pure-JAX f32 reference of the module's math (kernel uses bf16 matmul
    # inputs + bf16 store with f32 accumulation -> loose tolerance expected).
    x2d = x.reshape(-1, 784)
    ref = jnp.maximum(x2d @ w1 + b1[None, :], 0.0) @ w2 + b2[None, :]
    assert out.shape == (B, 10)
    assert jnp.allclose(out, ref, atol=5e-2, rtol=5e-2), (
        f"max abs err {jnp.max(jnp.abs(out - ref))}")

    print("KERNEL_OK")
</pallas_src>

<mosaic_0001>
module attributes {stable_mosaic.version = 11 : i64} {
  func.func @fast_mnist_kernel(%arg0: i32, %arg1: memref<128x784xf32, #tpu.memory_space<vmem>>, %arg2: memref<784x256xbf16, #tpu.memory_space<vmem>>, %arg3: memref<1x256xf32, #tpu.memory_space<vmem>>, %arg4: memref<256x128xbf16, #tpu.memory_space<vmem>>, %arg5: memref<1x128xf32, #tpu.memory_space<vmem>>, %arg6: memref<128x128xbf16, #tpu.memory_space<vmem>>) attributes {dimension_semantics = [#tpu.dimension_semantics<parallel>], iteration_bounds = array<i64: 1>, scalar_prefetch = 0 : i64, scratch_operands = 0 : i64, tpu.core_type = #tpu.core_type<tc>, window_params = [{transform_indices = @transform_0, window_bounds = array<i64: 128, 784>}, {pipeline_mode = #tpu.pipeline_mode<synchronous>, transform_indices = @transform_1, window_bounds = array<i64: 784, 256>}, {pipeline_mode = #tpu.pipeline_mode<synchronous>, transform_indices = @transform_2, window_bounds = array<i64: 1, 256>}, {pipeline_mode = #tpu.pipeline_mode<synchronous>, transform_indices = @transform_3, window_bounds = array<i64: 256, 128>}, {pipeline_mode = #tpu.pipeline_mode<synchronous>, transform_indices = @transform_4, window_bounds = array<i64: 1, 128>}, {transform_indices = @transform_5, window_bounds = array<i64: 128, 128>}]} {
    %c0 = arith.constant 0 : index
    %c0_0 = arith.constant 0 : index
    %0 = vector.load %arg1[%c0, %c0_0] : memref<128x784xf32, #tpu.memory_space<vmem>>, vector<128x784xf32>
    %1 = arith.truncf %0 : vector<128x784xf32> to vector<128x784xbf16>
    %c0_1 = arith.constant 0 : index
    %c0_2 = arith.constant 0 : index
    %2 = vector.load %arg2[%c0_1, %c0_2] : memref<784x256xbf16, #tpu.memory_space<vmem>>, vector<784x256xbf16>
    %cst = arith.constant dense<0.000000e+00> : vector<128x256xf32>
    %3 = tpu.matmul %1, %2, %cst {dimension_numbers = #tpu.dot_dimension_numbers<[1], [0], [0], [1], [0, 0, 1, 1], [], []>} : vector<128x784xbf16>, vector<784x256xbf16>, vector<128x256xf32> -> vector<128x256xf32>
    %c0_3 = arith.constant 0 : index
    %c0_4 = arith.constant 0 : index
    %4 = vector.load %arg3[%c0_3, %c0_4] : memref<1x256xf32, #tpu.memory_space<vmem>>, vector<1x256xf32>
    %5 = vector.broadcast %4 : vector<1x256xf32> to vector<128x256xf32>
    %6 = arith.addf %3, %5 : vector<128x256xf32>
    %cst_5 = arith.constant 0.000000e+00 : f32
    %7 = vector.broadcast %cst_5 : f32 to vector<128x256xf32>
    %8 = arith.maximumf %6, %7 : vector<128x256xf32>
    %9 = arith.truncf %8 : vector<128x256xf32> to vector<128x256xbf16>
    %c0_6 = arith.constant 0 : index
    %c0_7 = arith.constant 0 : index
    %10 = vector.load %arg4[%c0_6, %c0_7] : memref<256x128xbf16, #tpu.memory_space<vmem>>, vector<256x128xbf16>
    %cst_8 = arith.constant dense<0.000000e+00> : vector<128x128xf32>
    %11 = tpu.matmul %9, %10, %cst_8 {dimension_numbers = #tpu.dot_dimension_numbers<[1], [0], [0], [1], [0, 0, 1, 1], [], []>} : vector<128x256xbf16>, vector<256x128xbf16>, vector<128x128xf32> -> vector<128x128xf32>
    %c0_9 = arith.constant 0 : index
    %c0_10 = arith.constant 0 : index
    %12 = vector.load %arg5[%c0_9, %c0_10] : memref<1x128xf32, #tpu.memory_space<vmem>>, vector<1x128xf32>
    %13 = vector.broadcast %12 : vector<1x128xf32> to vector<128x128xf32>
    %14 = arith.addf %11, %13 : vector<128x128xf32>
    %15 = arith.truncf %14 : vector<128x128xf32> to vector<128x128xbf16>
    %c0_11 = arith.constant 0 : index
    %c0_12 = arith.constant 0 : index
    %16 = vector.load %arg6[%c0_11, %c0_12] : memref<128x128xbf16, #tpu.memory_space<vmem>>, vector<128x128xbf16>
    tpu.vector_store %arg6[%c0_11, %c0_12], %15 {strides = array<i32>} : memref<128x128xbf16, #tpu.memory_space<vmem>>, vector<128x128xbf16>,
    return
  }
  func.func @transform_0(%arg0: i32) -> (i32, i32) {
    %c0_i32 = arith.constant 0 : i32
    %c0_i32_0 = arith.constant 0 : i32
    return %arg0, %c0_i32 : i32, i32
  }
  func.func @transform_1(%arg0: i32) -> (i32, i32) {
    %c0_i32 = arith.constant 0 : i32
    %c0_i32_0 = arith.constant 0 : i32
    %c0_i32_1 = arith.constant 0 : i32
    return %c0_i32, %c0_i32_0 : i32, i32
  }
  func.func @transform_2(%arg0: i32) -> (i32, i32) {
    %c0_i32 = arith.constant 0 : i32
    %c0_i32_0 = arith.constant 0 : i32
    %c0_i32_1 = arith.constant 0 : i32
    return %c0_i32, %c0_i32_0 : i32, i32
  }
  func.func @transform_3(%arg0: i32) -> (i32, i32) {
    %c0_i32 = arith.constant 0 : i32
    %c0_i32_0 = arith.constant 0 : i32
    %c0_i32_1 = arith.constant 0 : i32
    return %c0_i32, %c0_i32_0 : i32, i32
  }
  func.func @transform_4(%arg0: i32) -> (i32, i32) {
    %c0_i32 = arith.constant 0 : i32
    %c0_i32_0 = arith.constant 0 : i32
    %c0_i32_1 = arith.constant 0 : i32
    return %c0_i32, %c0_i32_0 : i32, i32
  }
  func.func @transform_5(%arg0: i32) -> (i32, i32) {
    %c0_i32 = arith.constant 0 : i32
    %c0_i32_0 = arith.constant 0 : i32
    return %arg0, %c0_i32 : i32, i32
  }
}

</mosaic_0001>

<llo_original>
// kernel: tpu_custom_call.1
$region0: #{tpu_custom_call.1}
  #allocation0 [shape = 'u32[]', space=smem, size = 0x4, offset = 0x4, fixed_abs, tag = 'smem constant byte address 0x4 - core index']
  #allocation1 [shape = 'u32[144,128]{1,0:T(1,128)}', space=vmem, size = 0x12000, scoped, tag = 'internal scratch']
  %s0 = inlined_call_operand.vmem [shape: f32[128,784], index: 0, kind: input, shape index: {}]
  %s1 = inlined_call_operand.vmem [shape: bf16[784,256], index: 1, kind: input, shape index: {}]
  %s2 = inlined_call_operand.vmem [shape: f32[1,256], index: 2, kind: input, shape index: {}]
  %s3 = inlined_call_operand.vmem [shape: bf16[256,128], index: 3, kind: input, shape index: {}]
  %s4 = inlined_call_operand.vmem [shape: f32[1,128], index: 4, kind: input, shape index: {}]
  %s5 = inlined_call_operand.hbm [shape: bf16[128,128], index: 5, kind: output, shape index: {}]
  %s6 = sld [smem:[#allocation0]]
  $region30: #{tpu_custom_call.1} parent=0
    _
  %s8 = ssub.s32 1, %s6
  %s9 = scalar_select 0, %s8, %s6
  $region1: #{tpu_custom_call.1} parent=0
    #allocation2 [shape = 'u8[32768]{0}', space=vmem, size = 0x8000, scoped, tag = 'output window, operand 0, single buffered']
    #allocation3 [shape = 's32[1]{0}', space=sflag, size = 0x4, scoped, tag = 'scoped memory for tpu_custom_call.1']
    %10 = vsyncpa [#allocation3], 0
    // Predicated region
    $region2: #{tpu_custom_call.1} parent=1 // pred_check
      _
    $region3: #{tpu_custom_call.1} parent=1 // pred_check_branch
      %12 = sbr.rel (0) target = $region5
    $region4: #{tpu_custom_call.1} parent=1 // pred_region
      _
    $region5: #{tpu_custom_call.1} parent=1 // pred_fallthru
      _
    // Predicated region
    $region6: #{tpu_custom_call.1} parent=1 // pred_check
      _
    $region7: #{tpu_custom_call.1} parent=1 // pred_check_branch
      %14 = sbr.rel (0) target = $region9
    $region8: #{tpu_custom_call.1} parent=1 // pred_region
      _
    $region9: #{tpu_custom_call.1} parent=1 // pred_fallthru
      _
    // Predicated region
    $region10: #{tpu_custom_call.1} parent=1 // pred_check
      _
    $region11: #{tpu_custom_call.1} parent=1 // pred_check_branch
      %16 = sbr.rel (0) target = $region13
    $region12: #{tpu_custom_call.1} parent=1 // pred_region
      _
    $region13: #{tpu_custom_call.1} parent=1 // pred_fallthru
      _
    // Predicated region
    $region14: #{tpu_custom_call.1} parent=1 // pred_check
      _
    $region15: #{tpu_custom_call.1} parent=1 // pred_check_branch
      %18 = sbr.rel (0) target = $region17
    $region16: #{tpu_custom_call.1} parent=1 // pred_region
      _
    $region17: #{tpu_custom_call.1} parent=1 // pred_fallthru
      _
    // Predicated region
    $region18: #{tpu_custom_call.1} parent=1 // pred_check
      _
    $region19: #{tpu_custom_call.1} parent=1 // pred_check_branch
      %20 = sbr.rel (0) target = $region21
    $region20: #{tpu_custom_call.1} parent=1 // pred_region
      _
    $region21: #{tpu_custom_call.1} parent=1 // pred_fallthru
      _
    %v22 = vld [vmem:[%s0] sm:$0xff]
    %v23 = vld [vmem:[%s0 + $0x8] sm:$0xff]
    %v24 = vld [vmem:[%s0 + $0x10] sm:$0xff]
    %v25 = vld [vmem:[%s0 + $0x18] sm:$0xff]
    %v26 = vld [vmem:[%s0 + $0x20] sm:$0xff]
    %v27 = vld [vmem:[%s0 + $0x28] sm:$0xff]
    %v28 = vld [vmem:[%s0 + $0x30] sm:$0xff]
    %v29 = vld [vmem:[%s0 + $0x38] sm:$0xff]
    %v30 = vld [vmem:[%s0 + $0x40] sm:$0xff]
    %v31 = vld [vmem:[%s0 + $0x48] sm:$0xff]
    %v32 = vld [vmem:[%s0 + $0x50] sm:$0xff]
    %v33 = vld [vmem:[%s0 + $0x58] sm:$0xff]
    %v34 = vld [vmem:[%s0 + $0x60] sm:$0xff]
    %v35 = vld [vmem:[%s0 + $0x68] sm:$0xff]
    %v36 = vld [vmem:[%s0 + $0x70] sm:$0xff]
    %v37 = vld [vmem:[%s0 + $0x78] sm:$0xff]
    %v38 = vld [vmem:[%s0 + $0x80] sm:$0xff]
    %v39 = vld [vmem:[%s0 + $0x88] sm:$0xff]
    %v40 = vld [vmem:[%s0 + $0x90] sm:$0xff]
    %v41 = vld [vmem:[%s0 + $0x98] sm:$0xff]
    %v42 = vld [vmem:[%s0 + $0xa0] sm:$0xff]
    %v43 = vld [vmem:[%s0 + $0xa8] sm:$0xff]
    %v44 = vld [vmem:[%s0 + $0xb0] sm:$0xff]
    %v45 = vld [vmem:[%s0 + $0xb8] sm:$0xff]
    %v46 = vld [vmem:[%s0 + $0xc0] sm:$0xff]
    %v47 = vld [vmem:[%s0 + $0xc8] sm:$0xff]
    %v48 = vld [vmem:[%s0 + $0xd0] sm:$0xff]
    %v49 = vld [vmem:[%s0 + $0xd8] sm:$0xff]
    %v50 = vld [vmem:[%s0 + $0xe0] sm:$0xff]
    %v51 = vld [vmem:[%s0 + $0xe8] sm:$0xff]
    %v52 = vld [vmem:[%s0 + $0xf0] sm:$0xff]
    %v53 = vld [vmem:[%s0 + $0xf8] sm:$0xff]
    %v54 = vld [vmem:[%s0 + $0x100] sm:$0xff]
    %v55 = vld [vmem:[%s0 + $0x108] sm:$0xff]
    %v56 = vld [vmem:[%s0 + $0x110] sm:$0xff]
    %v57 = vld [vmem:[%s0 + $0x118] sm:$0xff]
    %v58 = vld [vmem:[%s0 + $0x120] sm:$0xff]
    %v59 = vld [vmem:[%s0 + $0x128] sm:$0xff]
    %v60 = vld [vmem:[%s0 + $0x130] sm:$0xff]
    %v61 = vld [vmem:[%s0 + $0x138] sm:$0xff]
    %v62 = vld [vmem:[%s0 + $0x140] sm:$0xff]
    %v63 = vld [vmem:[%s0 + $0x148] sm:$0xff]
    %v64 = vld [vmem:[%s0 + $0x150] sm:$0xff]
    %v65 = vld [vmem:[%s0 + $0x158] sm:$0xff]
    %v66 = vld [vmem:[%s0 + $0x160] sm:$0xff]
    %v67 = vld [vmem:[%s0 + $0x168] sm:$0xff]
    %v68 = vld [vmem:[%s0 + $0x170] sm:$0xff]
    %v69 = vld [vmem:[%s0 + $0x178] sm:$0xff]
    %v70 = vld [vmem:[%s0 + $0x180] sm:$0xff]
    %v71 = vld [vmem:[%s0 + $0x188] sm:$0xff]
    %v72 = vld [vmem:[%s0 + $0x190] sm:$0xff]
    %v73 = vld [vmem:[%s0 + $0x198] sm:$0xff]
    %v74 = vld [vmem:[%s0 + $0x1a0] sm:$0xff]
    %v75 = vld [vmem:[%s0 + $0x1a8] sm:$0xff]
    %v76 = vld [vmem:[%s0 + $0x1b0] sm:$0xff]
    %v77 = vld [vmem:[%s0 + $0x1b8] sm:$0xff]
    %v78 = vld [vmem:[%s0 + $0x1c0] sm:$0xff]
    %v79 = vld [vmem:[%s0 + $0x1c8] sm:$0xff]
    %v80 = vld [vmem:[%s0 + $0x1d0] sm:$0xff]
    %v81 = vld [vmem:[%s0 + $0x1d8] sm:$0xff]
    %v82 = vld [vmem:[%s0 + $0x1e0] sm:$0xff]
    %v83 = vld [vmem:[%s0 + $0x1e8] sm:$0xff]
    %v84 = vld [vmem:[%s0 + $0x1f0] sm:$0xff]
    %v85 = vld [vmem:[%s0 + $0x1f8] sm:$0xff]
    %v86 = vld [vmem:[%s0 + $0x200] sm:$0xff]
    %v87 = vld [vmem:[%s0 + $0x208] sm:$0xff]
    %v88 = vld [vmem:[%s0 + $0x210] sm:$0xff]
    %v89 = vld [vmem:[%s0 + $0x218] sm:$0xff]
    %v90 = vld [vmem:[%s0 + $0x220] sm:$0xff]
    %v91 = vld [vmem:[%s0 + $0x228] sm:$0xff]
    %v92 = vld [vmem:[%s0 + $0x230] sm:$0xff]
    %v93 = vld [vmem:[%s0 + $0x238] sm:$0xff]
    %v94 = vld [vmem:[%s0 + $0x240] sm:$0xff]
    %v95 = vld [vmem:[%s0 + $0x248] sm:$0xff]
    %v96 = vld [vmem:[%s0 + $0x250] sm:$0xff]
    %v97 = vld [vmem:[%s0 + $0x258] sm:$0xff]
    %v98 = vld [vmem:[%s0 + $0x260] sm:$0xff]
    %v99 = vld [vmem:[%s0 + $0x268] sm:$0xff]
    %v100 = vld [vmem:[%s0 + $0x270] sm:$0xff]
    %v101 = vld [vmem:[%s0 + $0x278] sm:$0xff]
    %v102 = vld [vmem:[%s0 + $0x280] sm:$0xff]
    %v103 = vld [vmem:[%s0 + $0x288] sm:$0xff]
    %v104 = vld [vmem:[%s0 + $0x290] sm:$0xff]
    %v105 = vld [vmem:[%s0 + $0x298] sm:$0xff]
    %v106 = vld [vmem:[%s0 + $0x2a0] sm:$0xff]
    %v107 = vld [vmem:[%s0 + $0x2a8] sm:$0xff]
    %v108 = vld [vmem:[%s0 + $0x2b0] sm:$0xff]
    %v109 = vld [vmem:[%s0 + $0x2b8] sm:$0xff]
    %v110 = vld [vmem:[%s0 + $0x2c0] sm:$0xff]
    %v111 = vld [vmem:[%s0 + $0x2c8] sm:$0xff]
    %v112 = vld [vmem:[%s0 + $0x2d0] sm:$0xff]
    %v113 = vld [vmem:[%s0 + $0x2d8] sm:$0xff]
    %v114 = vld [vmem:[%s0 + $0x2e0] sm:$0xff]
    %v115 = vld [vmem:[%s0 + $0x2e8] sm:$0xff]
    %v116 = vld [vmem:[%s0 + $0x2f0] sm:$0xff]
    %v117 = vld [vmem:[%s0 + $0x2f8] sm:$0xff]
    %v118 = vld [vmem:[%s0 + $0x300] sm:$0xff]
    %v119 = vld [vmem:[%s0 + $0x308] sm:$0xff]
    %v120 = vld [vmem:[%s0 + $0x310] sm:$0xff]
    %v121 = vld [vmem:[%s0 + $0x318] sm:$0xff]
    %v122 = vld [vmem:[%s0 + $0x320] sm:$0xff]
    %v123 = vld [vmem:[%s0 + $0x328] sm:$0xff]
    %v124 = vld [vmem:[%s0 + $0x330] sm:$0xff]
    %v125 = vld [vmem:[%s0 + $0x338] sm:$0xff]
    %v126 = vld [vmem:[%s0 + $0x340] sm:$0xff]
    %v127 = vld [vmem:[%s0 + $0x348] sm:$0xff]
    %v128 = vld [vmem:[%s0 + $0x350] sm:$0xff]
    %v129 = vld [vmem:[%s0 + $0x358] sm:$0xff]
    %v130 = vld [vmem:[%s0 + $0x360] sm:$0xff]
    %v131 = vld [vmem:[%s0 + $0x368] sm:$0xff]
    %v132 = vld [vmem:[%s0 + $0x370] sm:$0xff]
    %v133 = vld [vmem:[%s0 + $0x378] sm:$0xff]
    %v134 = vpack.c.bf16 %v29, %v22
    %v135 = vpack.c.bf16 %v30, %v23
    %v136 = vpack.c.bf16 %v31, %v24
    %v137 = vpack.c.bf16 %v32, %v25
    %v138 = vpack.c.bf16 %v33, %v26
    %v139 = vpack.c.bf16 %v34, %v27
    %v140 = vpack.c.bf16 %v35, %v28
    %v141 = vpack.c.bf16 %v43, %v36
    %v142 = vpack.c.bf16 %v44, %v37
    %v143 = vpack.c.bf16 %v45, %v38
    %v144 = vpack.c.bf16 %v46, %v39
    %v145 = vpack.c.bf16 %v47, %v40
    %v146 = vpack.c.bf16 %v48, %v41
    %v147 = vpack.c.bf16 %v49, %v42
    %v148 = vpack.c.bf16 %v57, %v50
    %v149 = vpack.c.bf16 %v58, %v51
    %v150 = vpack.c.bf16 %v59, %v52
    %v151 = vpack.c.bf16 %v60, %v53
    %v152 = vpack.c.bf16 %v61, %v54
    %v153 = vpack.c.bf16 %v62, %v55
    %v154 = vpack.c.bf16 %v63, %v56
    %v155 = vpack.c.bf16 %v71, %v64
    %v156 = vpack.c.bf16 %v72, %v65
    %v157 = vpack.c.bf16 %v73, %v66
    %v158 = vpack.c.bf16 %v74, %v67
    %v159 = vpack.c.bf16 %v75, %v68
    %v160 = vpack.c.bf16 %v76, %v69
    %v161 = vpack.c.bf16 %v77, %v70
    %v162 = vpack.c.bf16 %v85, %v78
    %v163 = vpack.c.bf16 %v86, %v79
    %v164 = vpack.c.bf16 %v87, %v80
    %v165 = vpack.c.bf16 %v88, %v81
    %v166 = vpack.c.bf16 %v89, %v82
    %v167 = vpack.c.bf16 %v90, %v83
    %v168 = vpack.c.bf16 %v91, %v84
    %v169 = vpack.c.bf16 %v99, %v92
    %v170 = vpack.c.bf16 %v100, %v93
    %v171 = vpack.c.bf16 %v101, %v94
    %v172 = vpack.c.bf16 %v102, %v95
    %v173 = vpack.c.bf16 %v103, %v96
    %v174 = vpack.c.bf16 %v104, %v97
    %v175 = vpack.c.bf16 %v105, %v98
    %v176 = vpack.c.bf16 %v113, %v106
    %v177 = vpack.c.bf16 %v114, %v107
    %v178 = vpack.c.bf16 %v115, %v108
    %v179 = vpack.c.bf16 %v116, %v109
    %v180 = vpack.c.bf16 %v117, %v110
    %v181 = vpack.c.bf16 %v118, %v111
    %v182 = vpack.c.bf16 %v119, %v112
    %v183 = vpack.c.bf16 %v127, %v120
    %v184 = vpack.c.bf16 %v128, %v121
    %v185 = vpack.c.bf16 %v129, %v122
    %v186 = vpack.c.bf16 %v130, %v123
    %v187 = vpack.c.bf16 %v131, %v124
    %v188 = vpack.c.bf16 %v132, %v125
    %v189 = vpack.c.bf16 %v133, %v126
    %v190 = vld [vmem:[%s1] sm:$0xff]
    %v191 = vld [vmem:[%s1 + $0x8] sm:$0xff]
    %v192 = vld [vmem:[%s1 + $0x10] sm:$0xff]
    %v193 = vld [vmem:[%s1 + $0x18] sm:$0xff]
    %v194 = vld [vmem:[%s1 + $0x20] sm:$0xff]
    %v195 = vld [vmem:[%s1 + $0x28] sm:$0xff]
    %v196 = vld [vmem:[%s1 + $0x30] sm:$0xff]
    %v197 = vld [vmem:[%s1 + $0x38] sm:$0xff]
    %v198 = vld [vmem:[%s1 + $0x40] sm:$0xff]
    %v199 = vld [vmem:[%s1 + $0x48] sm:$0xff]
    %v200 = vld [vmem:[%s1 + $0x50] sm:$0xff]
    %v201 = vld [vmem:[%s1 + $0x58] sm:$0xff]
    %v202 = vld [vmem:[%s1 + $0x60] sm:$0xff]
    %v203 = vld [vmem:[%s1 + $0x68] sm:$0xff]
    %v204 = vld [vmem:[%s1 + $0x70] sm:$0xff]
    %v205 = vld [vmem:[%s1 + $0x78] sm:$0xff]
    %v206 = vld [vmem:[%s1 + $0x80] sm:$0xff]
    %v207 = vld [vmem:[%s1 + $0x88] sm:$0xff]
    %v208 = vld [vmem:[%s1 + $0x90] sm:$0xff]
    %v209 = vld [vmem:[%s1 + $0x98] sm:$0xff]
    %v210 = vld [vmem:[%s1 + $0xa0] sm:$0xff]
    %v211 = vld [vmem:[%s1 + $0xa8] sm:$0xff]
    %v212 = vld [vmem:[%s1 + $0xb0] sm:$0xff]
    %v213 = vld [vmem:[%s1 + $0xb8] sm:$0xff]
    %v214 = vld [vmem:[%s1 + $0xc0] sm:$0xff]
    %v215 = vld [vmem:[%s1 + $0xc8] sm:$0xff]
    %v216 = vld [vmem:[%s1 + $0xd0] sm:$0xff]
    %v217 = vld [vmem:[%s1 + $0xd8] sm:$0xff]
    %v218 = vld [vmem:[%s1 + $0xe0] sm:$0xff]
    %v219 = vld [vmem:[%s1 + $0xe8] sm:$0xff]
    %v220 = vld [vmem:[%s1 + $0xf0] sm:$0xff]
    %v221 = vld [vmem:[%s1 + $0xf8] sm:$0xff]
    %v222 = vld [vmem:[%s1 + $0x100] sm:$0xff]
    %v223 = vld [vmem:[%s1 + $0x108] sm:$0xff]
    %v224 = vld [vmem:[%s1 + $0x110] sm:$0xff]
    %v225 = vld [vmem:[%s1 + $0x118] sm:$0xff]
    %v226 = vld [vmem:[%s1 + $0x120] sm:$0xff]
    %v227 = vld [vmem:[%s1 + $0x128] sm:$0xff]
    %v228 = vld [vmem:[%s1 + $0x130] sm:$0xff]
    %v229 = vld [vmem:[%s1 + $0x138] sm:$0xff]
    %v230 = vld [vmem:[%s1 + $0x140] sm:$0xff]
    %v231 = vld [vmem:[%s1 + $0x148] sm:$0xff]
    %v232 = vld [vmem:[%s1 + $0x150] sm:$0xff]
    %v233 = vld [vmem:[%s1 + $0x158] sm:$0xff]
    %v234 = vld [vmem:[%s1 + $0x160] sm:$0xff]
    %v235 = vld [vmem:[%s1 + $0x168] sm:$0xff]
    %v236 = vld [vmem:[%s1 + $0x170] sm:$0xff]
    %v237 = vld [vmem:[%s1 + $0x178] sm:$0xff]
    %v238 = vld [vmem:[%s1 + $0x180] sm:$0xff]
    %v239 = vld [vmem:[%s1 + $0x188] sm:$0xff]
    %v240 = vld [vmem:[%s1 + $0x190] sm:$0xff]
    %v241 = vld [vmem:[%s1 + $0x198] sm:$0xff]
    %v242 = vld [vmem:[%s1 + $0x1a0] sm:$0xff]
    %v243 = vld [vmem:[%s1 + $0x1a8] sm:$0xff]
    %v244 = vld [vmem:[%s1 + $0x1b0] sm:$0xff]
    %v245 = vld [vmem:[%s1 + $0x1b8] sm:$0xff]
    %v246 = vld [vmem:[%s1 + $0x1c0] sm:$0xff]
    %v247 = vld [vmem:[%s1 + $0x1c8] sm:$0xff]
    %v248 = vld [vmem:[%s1 + $0x1d0] sm:$0xff]
    %v249 = vld [vmem:[%s1 + $0x1d8] sm:$0xff]
    %v250 = vld [vmem:[%s1 + $0x1e0] sm:$0xff]
    %v251 = vld [vmem:[%s1 + $0x1e8] sm:$0xff]
    %v252 = vld [vmem:[%s1 + $0x1f0] sm:$0xff]
    %v253 = vld [vmem:[%s1 + $0x1f8] sm:$0xff]
    %v254 = vld [vmem:[%s1 + $0x200] sm:$0xff]
    %v255 = vld [vmem:[%s1 + $0x208] sm:$0xff]
    %v256 = vld [vmem:[%s1 + $0x210] sm:$0xff]
    %v257 = vld [vmem:[%s1 + $0x218] sm:$0xff]
    %v258 = vld [vmem:[%s1 + $0x220] sm:$0xff]
    %v259 = vld [vmem:[%s1 + $0x228] sm:$0xff]
    %v260 = vld [vmem:[%s1 + $0x230] sm:$0xff]
    %v261 = vld [vmem:[%s1 + $0x238] sm:$0xff]
    %v262 = vld [vmem:[%s1 + $0x240] sm:$0xff]
    %v263 = vld [vmem:[%s1 + $0x248] sm:$0xff]
    %v264 = vld [vmem:[%s1 + $0x250] sm:$0xff]
    %v265 = vld [vmem:[%s1 + $0x258] sm:$0xff]
    %v266 = vld [vmem:[%s1 + $0x260] sm:$0xff]
    %v267 = vld [vmem:[%s1 + $0x268] sm:$0xff]
    %v268 = vld [vmem:[%s1 + $0x270] sm:$0xff]
    %v269 = vld [vmem:[%s1 + $0x278] sm:$0xff]
    %v270 = vld [vmem:[%s1 + $0x280] sm:$0xff]
    %v271 = vld [vmem:[%s1 + $0x288] sm:$0xff]
    %v272 = vld [vmem:[%s1 + $0x290] sm:$0xff]
    %v273 = vld [vmem:[%s1 + $0x298] sm:$0xff]
    %v274 = vld [vmem:[%s1 + $0x2a0] sm:$0xff]
    %v275 = vld [vmem:[%s1 + $0x2a8] sm:$0xff]
    %v276 = vld [vmem:[%s1 + $0x2b0] sm:$0xff]
    %v277 = vld [vmem:[%s1 + $0x2b8] sm:$0xff]
    %v278 = vld [vmem:[%s1 + $0x2c0] sm:$0xff]
    %v279 = vld [vmem:[%s1 + $0x2c8] sm:$0xff]
    %v280 = vld [vmem:[%s1 + $0x2d0] sm:$0xff]
    %v281 = vld [vmem:[%s1 + $0x2d8] sm:$0xff]
    %v282 = vld [vmem:[%s1 + $0x2e0] sm:$0xff]
    %v283 = vld [vmem:[%s1 + $0x2e8] sm:$0xff]
    %v284 = vld [vmem:[%s1 + $0x2f0] sm:$0xff]
    %v285 = vld [vmem:[%s1 + $0x2f8] sm:$0xff]
    %v286 = vld [vmem:[%s1 + $0x300] sm:$0xff]
    %v287 = vld [vmem:[%s1 + $0x308] sm:$0xff]
    %v288 = vld [vmem:[%s2] sm:$0x3]
    %v290 = vlaneseq
    %v291 = vshrl.u32 %v290, 7
    %v292 = vsub.s32 0, %v291
    %v293 = vrot.slane %v288, %v292
    %v294 = vlaneseq
    %v295 = vshrl.u32 %v294, 7
    %v296 = vsub.s32 1, %v295
    %v297 = vrot.slane %v288, %v296
    %v398 = vunpack.c.l.b16 %v190
    %v399 = vunpack.c.h.b16 %v190
    %v400 = vunpack.c.l.b16 %v191
    %v401 = vunpack.c.h.b16 %v191
    %v402 = vunpack.c.l.b16 %v192
    %v403 = vunpack.c.h.b16 %v192
    %v404 = vunpack.c.l.b16 %v193
    %v405 = vunpack.c.h.b16 %v193
    %v406 = vunpack.c.l.b16 %v194
    %v407 = vunpack.c.h.b16 %v194
    %v408 = vunpack.c.l.b16 %v195
    %v409 = vunpack.c.h.b16 %v195
    %v410 = vunpack.c.l.b16 %v196
    %v411 = vunpack.c.h.b16 %v196
    %v412 = vunpack.c.l.b16 %v197
    %v413 = vunpack.c.h.b16 %v197
    %v414 = vunpack.c.l.b16 %v198
    %v415 = vunpack.c.h.b16 %v198
    %v416 = vunpack.c.l.b16 %v199
    %v417 = vunpack.c.h.b16 %v199
    %v418 = vunpack.c.l.b16 %v200
    %v419 = vunpack.c.h.b16 %v200
    %v420 = vunpack.c.l.b16 %v201
    %v421 = vunpack.c.h.b16 %v201
    %v422 = vunpack.c.l.b16 %v202
    %v423 = vunpack.c.h.b16 %v202
    %v424 = vunpack.c.l.b16 %v203
    %v425 = vunpack.c.h.b16 %v203
    %v426 = vunpack.c.l.b16 %v204
    %v427 = vunpack.c.h.b16 %v204
    %v428 = vunpack.c.l.b16 %v205
    %v429 = vunpack.c.h.b16 %v205
    %v430 = vunpack.c.l.b16 %v206
    %v431 = vunpack.c.h.b16 %v206
    %v432 = vunpack.c.l.b16 %v207
    %v433 = vunpack.c.h.b16 %v207
    %v434 = vunpack.c.l.b16 %v208
    %v435 = vunpack.c.h.b16 %v208
    %v436 = vunpack.c.l.b16 %v209
    %v437 = vunpack.c.h.b16 %v209
    %v438 = vunpack.c.l.b16 %v210
    %v439 = vunpack.c.h.b16 %v210
    %v440 = vunpack.c.l.b16 %v211
    %v441 = vunpack.c.h.b16 %v211
    %v442 = vunpack.c.l.b16 %v212
    %v443 = vunpack.c.h.b16 %v212
    %v444 = vunpack.c.l.b16 %v213
    %v445 = vunpack.c.h.b16 %v213
    %v446 = vunpack.c.l.b16 %v214
    %v447 = vunpack.c.h.b16 %v214
    %v448 = vunpack.c.l.b16 %v215
    %v449 = vunpack.c.h.b16 %v215
    %v450 = vunpack.c.l.b16 %v216
    %v451 = vunpack.c.h.b16 %v216
    %v452 = vunpack.c.l.b16 %v217
    %v453 = vunpack.c.h.b16 %v217
    %v454 = vunpack.c.l.b16 %v218
    %v455 = vunpack.c.h.b16 %v218
    %v456 = vunpack.c.l.b16 %v219
    %v457 = vunpack.c.h.b16 %v219
    %v458 = vunpack.c.l.b16 %v220
    %v459 = vunpack.c.h.b16 %v220
    %v460 = vunpack.c.l.b16 %v221
    %v461 = vunpack.c.h.b16 %v221
    %v462 = vunpack.c.l.b16 %v222
    %v463 = vunpack.c.h.b16 %v222
    %v464 = vunpack.c.l.b16 %v223
    %v465 = vunpack.c.h.b16 %v223
    %v466 = vunpack.c.l.b16 %v224
    %v467 = vunpack.c.h.b16 %v224
    %v468 = vunpack.c.l.b16 %v225
    %v469 = vunpack.c.h.b16 %v225
    %v470 = vunpack.c.l.b16 %v226
    %v471 = vunpack.c.h.b16 %v226
    %v472 = vunpack.c.l.b16 %v227
    %v473 = vunpack.c.h.b16 %v227
    %v474 = vunpack.c.l.b16 %v228
    %v475 = vunpack.c.h.b16 %v228
    %v476 = vunpack.c.l.b16 %v229
    %v477 = vunpack.c.h.b16 %v229
    %v478 = vunpack.c.l.b16 %v230
    %v479 = vunpack.c.h.b16 %v230
    %v480 = vunpack.c.l.b16 %v231
    %v481 = vunpack.c.h.b16 %v231
    %v482 = vunpack.c.l.b16 %v232
    %v483 = vunpack.c.h.b16 %v232
    %v484 = vunpack.c.l.b16 %v233
    %v485 = vunpack.c.h.b16 %v233
    %v486 = vunpack.c.l.b16 %v234
    %v487 = vunpack.c.h.b16 %v234
    %v488 = vunpack.c.l.b16 %v235
    %v489 = vunpack.c.h.b16 %v235
    %v490 = vunpack.c.l.b16 %v236
    %v491 = vunpack.c.h.b16 %v236
    %v492 = vunpack.c.l.b16 %v237
    %v493 = vunpack.c.h.b16 %v237
    %v494 = vunpack.c.l.b16 %v238
    %v495 = vunpack.c.h.b16 %v238
    %v496 = vunpack.c.l.b16 %v239
    %v497 = vunpack.c.h.b16 %v239
    %v498 = vunpack.c.l.b16 %v240
    %v499 = vunpack.c.h.b16 %v240
    %v500 = vunpack.c.l.b16 %v241
    %v501 = vunpack.c.h.b16 %v241
    %v502 = vunpack.c.l.b16 %v242
    %v503 = vunpack.c.h.b16 %v242
    %v504 = vunpack.c.l.b16 %v243
    %v505 = vunpack.c.h.b16 %v243
    %v506 = vunpack.c.l.b16 %v244
    %v507 = vunpack.c.h.b16 %v244
    %v508 = vunpack.c.l.b16 %v245
    %v509 = vunpack.c.h.b16 %v245
    %v510 = vunpack.c.l.b16 %v246
    %v511 = vunpack.c.h.b16 %v246
    %v512 = vunpack.c.l.b16 %v247
    %v513 = vunpack.c.h.b16 %v247
    %v514 = vunpack.c.l.b16 %v248
    %v515 = vunpack.c.h.b16 %v248
    %v516 = vunpack.c.l.b16 %v249
    %v517 = vunpack.c.h.b16 %v249
    %v518 = vunpack.c.l.b16 %v250
    %v519 = vunpack.c.h.b16 %v250
    %v520 = vunpack.c.l.b16 %v251
    %v521 = vunpack.c.h.b16 %v251
    %v522 = vunpack.c.l.b16 %v252
    %v523 = vunpack.c.h.b16 %v252
    %v524 = vunpack.c.l.b16 %v253
    %v525 = vunpack.c.h.b16 %v253
    %v526 = vunpack.c.l.b16 %v254
    %v527 = vunpack.c.h.b16 %v254
    %v528 = vunpack.c.l.b16 %v255
    %v529 = vunpack.c.h.b16 %v255
    %v530 = vunpack.c.l.b16 %v256
    %v531 = vunpack.c.h.b16 %v256
    %v532 = vunpack.c.l.b16 %v257
    %v533 = vunpack.c.h.b16 %v257
    %v534 = vunpack.c.l.b16 %v258
    %v535 = vunpack.c.h.b16 %v258
    %v536 = vunpack.c.l.b16 %v259
    %v537 = vunpack.c.h.b16 %v259
    %v538 = vunpack.c.l.b16 %v260
    %v539 = vunpack.c.h.b16 %v260
    %v540 = vunpack.c.l.b16 %v261
    %v541 = vunpack.c.h.b16 %v261
    %v542 = vunpack.c.l.b16 %v262
    %v543 = vunpack.c.h.b16 %v262
    %v544 = vunpack.c.l.b16 %v263
    %v545 = vunpack.c.h.b16 %v263
    %v546 = vunpack.c.l.b16 %v264
    %v547 = vunpack.c.h.b16 %v264
    %v548 = vunpack.c.l.b16 %v265
    %v549 = vunpack.c.h.b16 %v265
    %v550 = vunpack.c.l.b16 %v266
    %v551 = vunpack.c.h.b16 %v266
    %v552 = vunpack.c.l.b16 %v267
    %v553 = vunpack.c.h.b16 %v267
    %v554 = vunpack.c.l.b16 %v268
    %v555 = vunpack.c.h.b16 %v268
    %v556 = vunpack.c.l.b16 %v269
    %v557 = vunpack.c.h.b16 %v269
    %v558 = vunpack.c.l.b16 %v270
    %v559 = vunpack.c.h.b16 %v270
    %v560 = vunpack.c.l.b16 %v271
    %v561 = vunpack.c.h.b16 %v271
    %v562 = vunpack.c.l.b16 %v272
    %v563 = vunpack.c.h.b16 %v272
    %v564 = vunpack.c.l.b16 %v273
    %v565 = vunpack.c.h.b16 %v273
    %v566 = vunpack.c.l.b16 %v274
    %v567 = vunpack.c.h.b16 %v274
    %v568 = vunpack.c.l.b16 %v275
    %v569 = vunpack.c.h.b16 %v275
    %v570 = vunpack.c.l.b16 %v276
    %v571 = vunpack.c.h.b16 %v276
    %v572 = vunpack.c.l.b16 %v277
    %v573 = vunpack.c.h.b16 %v277
    %v574 = vunpack.c.l.b16 %v278
    %v575 = vunpack.c.h.b16 %v278
    %v576 = vunpack.c.l.b16 %v279
    %v577 = vunpack.c.h.b16 %v279
    %v578 = vunpack.c.l.b16 %v280
    %v579 = vunpack.c.h.b16 %v280
    %v580 = vunpack.c.l.b16 %v281
    %v581 = vunpack.c.h.b16 %v281
    %v582 = vunpack.c.l.b16 %v282
    %v583 = vunpack.c.h.b16 %v282
    %v584 = vunpack.c.l.b16 %v283
    %v585 = vunpack.c.h.b16 %v283
    %v586 = vunpack.c.l.b16 %v284
    %v587 = vunpack.c.h.b16 %v284
    %v588 = vunpack.c.l.b16 %v285
    %v589 = vunpack.c.h.b16 %v285
    %v590 = vunpack.c.l.b16 %v286
    %v591 = vunpack.c.h.b16 %v286
    %v592 = vunpack.c.l.b16 %v287
    %v593 = vunpack.c.h.b16 %v287
    %v594 = vpack.c.b16 %v400, %v398
    %v595 = vpack.c.b16 %v401, %v399
    %v596 = vpack.c.b16 %v404, %v402
    %v597 = vpack.c.b16 %v405, %v403
    %v598 = vpack.c.b16 %v408, %v406
    %v599 = vpack.c.b16 %v409, %v407
    %v600 = vpack.c.b16 %v412, %v410
    %v601 = vpack.c.b16 %v413, %v411
    %v602 = vpack.c.b16 %v416, %v414
    %v603 = vpack.c.b16 %v417, %v415
    %v604 = vpack.c.b16 %v420, %v418
    %v605 = vpack.c.b16 %v421, %v419
    %v606 = vpack.c.b16 %v424, %v422
    %v607 = vpack.c.b16 %v425, %v423
    %v608 = vpack.c.b16 %v428, %v426
    %v609 = vpack.c.b16 %v429, %v427
    %v610 = vpack.c.b16 %v432, %v430
    %v611 = vpack.c.b16 %v433, %v431
    %v612 = vpack.c.b16 %v436, %v434
    %v613 = vpack.c.b16 %v437, %v435
    %v614 = vpack.c.b16 %v440, %v438
    %v615 = vpack.c.b16 %v441, %v439
    %v616 = vpack.c.b16 %v444, %v442
    %v617 = vpack.c.b16 %v445, %v443
    %v618 = vpack.c.b16 %v448, %v446
    %v619 = vpack.c.b16 %v449, %v447
    %v620 = vpack.c.b16 %v452, %v450
    %v621 = vpack.c.b16 %v453, %v451
    %v622 = vpack.c.b16 %v456, %v454
    %v623 = vpack.c.b16 %v457, %v455
    %v624 = vpack.c.b16 %v460, %v458
    %v625 = vpack.c.b16 %v461, %v459
    %v626 = vpack.c.b16 %v464, %v462
    %v627 = vpack.c.b16 %v465, %v463
    %v628 = vpack.c.b16 %v468, %v466
    %v629 = vpack.c.b16 %v469, %v467
    %v630 = vpack.c.b16 %v472, %v470
    %v631 = vpack.c.b16 %v473, %v471
    %v632 = vpack.c.b16 %v476, %v474
    %v633 = vpack.c.b16 %v477, %v475
    %v634 = vpack.c.b16 %v480, %v478
    %v635 = vpack.c.b16 %v481, %v479
    %v636 = vpack.c.b16 %v484, %v482
    %v637 = vpack.c.b16 %v485, %v483
    %v638 = vpack.c.b16 %v488, %v486
    %v639 = vpack.c.b16 %v489, %v487
    %v640 = vpack.c.b16 %v492, %v490
    %v641 = vpack.c.b16 %v493, %v491
    %v642 = vpack.c.b16 %v496, %v494
    %v643 = vpack.c.b16 %v497, %v495
    %v644 = vpack.c.b16 %v500, %v498
    %v645 = vpack.c.b16 %v501, %v499
    %v646 = vpack.c.b16 %v504, %v502
    %v647 = vpack.c.b16 %v505, %v503
    %v648 = vpack.c.b16 %v508, %v506
    %v649 = vpack.c.b16 %v509, %v507
    %v650 = vpack.c.b16 %v512, %v510
    %v651 = vpack.c.b16 %v513, %v511
    %v652 = vpack.c.b16 %v516, %v514
    %v653 = vpack.c.b16 %v517, %v515
    %v654 = vpack.c.b16 %v520, %v518
    %v655 = vpack.c.b16 %v521, %v519
    %v656 = vpack.c.b16 %v524, %v522
    %v657 = vpack.c.b16 %v525, %v523
    %v658 = vpack.c.b16 %v528, %v526
    %v659 = vpack.c.b16 %v529, %v527
    %v660 = vpack.c.b16 %v532, %v530
    %v661 = vpack.c.b16 %v533, %v531
    %v662 = vpack.c.b16 %v536, %v534
    %v663 = vpack.c.b16 %v537, %v535
    %v664 = vpack.c.b16 %v540, %v538
    %v665 = vpack.c.b16 %v541, %v539
    %v666 = vpack.c.b16 %v544, %v542
    %v667 = vpack.c.b16 %v545, %v543
    %v668 = vpack.c.b16 %v548, %v546
    %v669 = vpack.c.b16 %v549, %v547
    %v670 = vpack.c.b16 %v552, %v550
    %v671 = vpack.c.b16 %v553, %v551
    %v672 = vpack.c.b16 %v556, %v554
    %v673 = vpack.c.b16 %v557, %v555
    %v674 = vpack.c.b16 %v560, %v558
    %v675 = vpack.c.b16 %v561, %v559
    %v676 = vpack.c.b16 %v564, %v562
    %v677 = vpack.c.b16 %v565, %v563
    %v678 = vpack.c.b16 %v568, %v566
    %v679 = vpack.c.b16 %v569, %v567
    %v680 = vpack.c.b16 %v572, %v570
    %v681 = vpack.c.b16 %v573, %v571
    %v682 = vpack.c.b16 %v576, %v574
    %v683 = vpack.c.b16 %v577, %v575
    %v684 = vpack.c.b16 %v580, %v578
    %v685 = vpack.c.b16 %v581, %v579
    %v686 = vpack.c.b16 %v584, %v582
    %v687 = vpack.c.b16 %v585, %v583
    %v688 = vpack.c.b16 %v588, %v586
    %v689 = vpack.c.b16 %v589, %v587
    %v690 = vpack.c.b16 %v592, %v590
    %v691 = vpack.c.b16 %v593, %v591
    %vm790 = vcmask 130048
    %v792 = vsel %vm790, %v140, 0
    %v795 = vsel %vm790, %v147, 0
    %v798 = vsel %vm790, %v154, 0
    %v801 = vsel %vm790, %v161, 0
    %v804 = vsel %vm790, %v168, 0
    %v807 = vsel %vm790, %v175, 0
    %v810 = vsel %vm790, %v182, 0
    %v813 = vsel %vm790, %v189, 0
    %815 = vmatprep.subr.bf16.mxu0 %v595
    %816 = vmatpush1.bf16.msra.mxu0 %v594
    %817 = vmatprep.subr.bf16.mxu0 %v597
    %818 = vmatpush1.bf16.msra.mxu0 %v596
    %819 = vmatprep.subr.bf16.mxu0 %v599
    %820 = vmatpush1.bf16.msra.mxu0 %v598
    %821 = vmatprep.subr.bf16.mxu0 %v601
    %822 = vmatpush1.bf16.msra.mxu0 %v600
    %823 = vmatprep.subr.bf16.mxu0 %v603
    %824 = vmatpush1.bf16.msra.mxu0 %v602
    %825 = vmatprep.subr.bf16.mxu0 %v605
    %826 = vmatpush1.bf16.msra.mxu0 %v604
    %827 = vmatprep.subr.bf16.mxu0 %v607
    %828 = vmatpush1.bf16.msra.mxu0 %v606
    %829 = vmatprep.subr.bf16.mxu0 %v609
    %830 = vmatpush1.bf16.msra.mxu0 %v608
    %831 = vmatprep.subr.bf16.mxu0 %v611
    %832 = vmatpush1.bf16.msra.mxu0 %v610
    %833 = vmatprep.subr.bf16.mxu0 %v613
    %834 = vmatpush1.bf16.msra.mxu0 %v612
    %835 = vmatprep.subr.bf16.mxu0 %v615
    %836 = vmatpush1.bf16.msra.mxu0 %v614
    %837 = vmatprep.subr.bf16.mxu0 %v617
    %838 = vmatpush1.bf16.msra.mxu0 %v616
    %839 = vmatprep.subr.bf16.mxu0 %v619
    %840 = vmatpush1.bf16.msra.mxu0 %v618
    %841 = vmatprep.subr.bf16.mxu0 %v621
    %842 = vmatpush1.bf16.msra.mxu0 %v620
    %843 = vmatprep.subr.bf16.mxu0 %v623
    %844 = vmatpush1.bf16.msra.mxu0 %v622
    %845 = vmatprep.subr.bf16.mxu0 %v625
    %846 = vmatpush1.bf16.msra.mxu0 %v624
    %847 = vmatprep.mubr.bf16.mxu0 %v135
    %848 = vmatmul.mubr.bf16.gmra.mrb[0].mxu0 %v134
    %v849 = vpop.f32.mrb[0].mxu0
    %v850 = vadd.f32 %v293, %v849
    %v851 = vpop.f32.mrb[0].mxu0
    %v852 = vadd.f32 %v297, %v851
    %v853 = vpop.f32.mrb[0].mxu0
    %v854 = vadd.f32 %v293, %v853
    %v855 = vpop.f32.mrb[0].mxu0
    %v856 = vadd.f32 %v297, %v855
    %857 = vmatprep.mubr.bf16.mxu0 %v142
    %858 = vmatmul.mubr.bf16.gmra.mrb[0].mxu0 %v141
    %v859 = vpop.f32.mrb[0].mxu0
    %v860 = vadd.f32 %v293, %v859
    %v861 = vpop.f32.mrb[0].mxu0
    %v862 = vadd.f32 %v297, %v861
    %v863 = vpop.f32.mrb[0].mxu0
    %v864 = vadd.f32 %v293, %v863
    %v865 = vpop.f32.mrb[0].mxu0
    %v866 = vadd.f32 %v297, %v865
    %867 = vmatprep.mubr.bf16.mxu0 %v149
    %868 = vmatmul.mubr.bf16.gmra.mrb[0].mxu0 %v148
    %v869 = vpop.f32.mrb[0].mxu0
    %v870 = vadd.f32 %v293, %v869
    %v871 = vpop.f32.mrb[0].mxu0
    %v872 = vadd.f32 %v297, %v871
    %v873 = vpop.f32.mrb[0].mxu0
    %v874 = vadd.f32 %v293, %v873
    %v875 = vpop.f32.mrb[0].mxu0
    %v876 = vadd.f32 %v297, %v875
    %877 = vmatprep.mubr.bf16.mxu0 %v156
    %878 = vmatmul.mubr.bf16.gmra.mrb[0].mxu0 %v155
    %v879 = vpop.f32.mrb[0].mxu0
    %v880 = vadd.f32 %v293, %v879
    %v881 = vpop.f32.mrb[0].mxu0
    %v882 = vadd.f32 %v297, %v881
    %v883 = vpop.f32.mrb[0].mxu0
    %v884 = vadd.f32 %v293, %v883
    %v885 = vpop.f32.mrb[0].mxu0
    %v886 = vadd.f32 %v297, %v885
    %887 = vmatprep.mubr.bf16.mxu0 %v163
    %888 = vmatmul.mubr.bf16.gmra.mrb[0].mxu0 %v162
    %v889 = vpop.f32.mrb[0].mxu0
    %v890 = vadd.f32 %v293, %v889
    %v891 = vpop.f32.mrb[0].mxu0
    %v892 = vadd.f32 %v297, %v891
    %v893 = vpop.f32.mrb[0].mxu0
    %v894 = vadd.f32 %v293, %v893
    %v895 = vpop.f32.mrb[0].mxu0
    %v896 = vadd.f32 %v297, %v895
    %897 = vmatprep.mubr.bf16.mxu0 %v170
    %898 = vmatmul.mubr.bf16.gmra.mrb[0].mxu0 %v169
    %v899 = vpop.f32.mrb[0].mxu0
    %v900 = vadd.f32 %v293, %v899
    %v901 = vpop.f32.mrb[0].mxu0
    %v902 = vadd.f32 %v297, %v901
    %v903 = vpop.f32.mrb[0].mxu0
    %v904 = vadd.f32 %v293, %v903
    %v905 = vpop.f32.mrb[0].mxu0
    %v906 = vadd.f32 %v297, %v905
    %907 = vmatprep.mubr.bf16.mxu0 %v177
    %908 = vmatmul.mubr.bf16.gmra.mrb[0].mxu0 %v176
    %v909 = vpop.f32.mrb[0].mxu0
    %v910 = vadd.f32 %v293, %v909
    %v911 = vpop.f32.mrb[0].mxu0
    %v912 = vadd.f32 %v297, %v911
    %v913 = vpop.f32.mrb[0].mxu0
    %v914 = vadd.f32 %v293, %v913
    %v915 = vpop.f32.mrb[0].mxu0
    %v916 = vadd.f32 %v297, %v915
    %917 = vmatprep.mubr.bf16.mxu0 %v184
    %918 = vmatmul.mubr.bf16.gmra.mrb[0].mxu0 %v183
    %v919 = vpop.f32.mrb[0].mxu0
    %v920 = vadd.f32 %v293, %v919
    %v921 = vpop.f32.mrb[0].mxu0
    %v922 = vadd.f32 %v297, %v921
    %v923 = vpop.f32.mrb[0].mxu0
    %v924 = vadd.f32 %v293, %v923
    %v925 = vpop.f32.mrb[0].mxu0
    %v926 = vadd.f32 %v297, %v925
    %927 = vdwg.mxu0
    %928 = vmatprep.subr.bf16.mxu0 %v627
    %929 = vmatpush1.bf16.msra.mxu0 %v626
    %930 = vmatprep.subr.bf16.mxu0 %v629
    %931 = vmatpush1.bf16.msra.mxu0 %v628
    %932 = vmatprep.subr.bf16.mxu0 %v631
    %933 = vmatpush1.bf16.msra.mxu0 %v630
    %934 = vmatprep.subr.bf16.mxu0 %v633
    %935 = vmatpush1.bf16.msra.mxu0 %v632
    %936 = vmatprep.subr.bf16.mxu0 %v635
    %937 = vmatpush1.bf16.msra.mxu0 %v634
    %938 = vmatprep.subr.bf16.mxu0 %v637
    %939 = vmatpush1.bf16.msra.mxu0 %v636
    %940 = vmatprep.subr.bf16.mxu0 %v639
    %941 = vmatpush1.bf16.msra.mxu0 %v638
    %942 = vmatprep.subr.bf16.mxu0 %v641
    %943 = vmatpush1.bf16.msra.mxu0 %v640
    %944 = vmatprep.subr.bf16.mxu0 %v643
    %945 = vmatpush1.bf16.msra.mxu0 %v642
    %946 = vmatprep.subr.bf16.mxu0 %v645
    %947 = vmatpush1.bf16.msra.mxu0 %v644
    %948 = vmatprep.subr.bf16.mxu0 %v647
    %949 = vmatpush1.bf16.msra.mxu0 %v646
    %950 = vmatprep.subr.bf16.mxu0 %v649
    %951 = vmatpush1.bf16.msra.mxu0 %v648
    %952 = vmatprep.subr.bf16.mxu0 %v651
    %953 = vmatpush1.bf16.msra.mxu0 %v650
    %954 = vmatprep.subr.bf16.mxu0 %v653
    %955 = vmatpush1.bf16.msra.mxu0 %v652
    %956 = vmatprep.subr.bf16.mxu0 %v655
    %957 = vmatpush1.bf16.msra.mxu0 %v654
    %958 = vmatprep.subr.bf16.mxu0 %v657
    %959 = vmatpush1.bf16.msra.mxu0 %v656
    %960 = vmatprep.mubr.bf16.mxu0 %v137
    %961 = vmatmul.mubr.bf16.gmra.mrb[0].mxu0 %v136
    %v962 = vpop.f32.mrb[0].mxu0
    %v963 = vadd.f32 %v850, %v962
    %v964 = vpop.f32.mrb[0].mxu0
    %v965 = vadd.f32 %v852, %v964
    %v966 = vpop.f32.mrb[0].mxu0
    %v967 = vadd.f32 %v854, %v966
    %v968 = vpop.f32.mrb[0].mxu0
    %v969 = vadd.f32 %v856, %v968
    %970 = vmatprep.mubr.bf16.mxu0 %v144
    %971 = vmatmul.mubr.bf16.gmra.mrb[0].mxu0 %v143
    %v972 = vpop.f32.mrb[0].mxu0
    %v973 = vadd.f32 %v860, %v972
    %v974 = vpop.f32.mrb[0].mxu0
    %v975 = vadd.f32 %v862, %v974
    %v976 = vpop.f32.mrb[0].mxu0
    %v977 = vadd.f32 %v864, %v976
    %v978 = vpop.f32.mrb[0].mxu0
    %v979 = vadd.f32 %v866, %v978
    %980 = vmatprep.mubr.bf16.mxu0 %v151
    %981 = vmatmul.mubr.bf16.gmra.mrb[0].mxu0 %v150
    %v982 = vpop.f32.mrb[0].mxu0
    %v983 = vadd.f32 %v870, %v982
    %v984 = vpop.f32.mrb[0].mxu0
    %v985 = vadd.f32 %v872, %v984
    %v986 = vpop.f32.mrb[0].mxu0
    %v987 = vadd.f32 %v874, %v986
    %v988 = vpop.f32.mrb[0].mxu0
    %v989 = vadd.f32 %v876, %v988
    %990 = vmatprep.mubr.bf16.mxu0 %v158
    %991 = vmatmul.mubr.bf16.gmra.mrb[0].mxu0 %v157
    %v992 = vpop.f32.mrb[0].mxu0
    %v993 = vadd.f32 %v880, %v992
    %v994 = vpop.f32.mrb[0].mxu0
    %v995 = vadd.f32 %v882, %v994
    %v996 = vpop.f32.mrb[0].mxu0
    %v997 = vadd.f32 %v884, %v996
    %v998 = vpop.f32.mrb[0].mxu0
    %v999 = vadd.f32 %v886, %v998
    %1000 = vmatprep.mubr.bf16.mxu0 %v165
    %1001 = vmatmul.mubr.bf16.gmra.mrb[0].mxu0 %v164
    %v1002 = vpop.f32.mrb[0].mxu0
    %v1003 = vadd.f32 %v890, %v1002
    %v1004 = vpop.f32.mrb[0].mxu0
    %v1005 = vadd.f32 %v892, %v1004
    %v1006 = vpop.f32.mrb[0].mxu0
    %v1007 = vadd.f32 %v894, %v1006
    %v1008 = vpop.f32.mrb[0].mxu0
    %v1009 = vadd.f32 %v896, %v1008
    %1010 = vmatprep.mubr.bf16.mxu0 %v172
    %1011 = vmatmul.mubr.bf16.gmra.mrb[0].mxu0 %v171
    %v1012 = vpop.f32.mrb[0].mxu0
    %v1013 = vadd.f32 %v900, %v1012
    %v1014 = vpop.f32.mrb[0].mxu0
    %v1015 = vadd.f32 %v902, %v1014
    %v1016 = vpop.f32.mrb[0].mxu0
    %v1017 = vadd.f32 %v904, %v1016
    %v1018 = vpop.f32.mrb[0].mxu0
    %v1019 = vadd.f32 %v906, %v1018
    %1020 = vmatprep.mubr.bf16.mxu0 %v179
    %1021 = vmatmul.mubr.bf16.gmra.mrb[0].mxu0 %v178
    %v1022 = vpop.f32.mrb[0].mxu0
    %v1023 = vadd.f32 %v910, %v1022
    %v1024 = vpop.f32.mrb[0].mxu0
    %v1025 = vadd.f32 %v912, %v1024
    %v1026 = vpop.f32.mrb[0].mxu0
    %v1027 = vadd.f32 %v914, %v1026
    %v1028 = vpop.f32.mrb[0].mxu0
    %v1029 = vadd.f32 %v916, %v1028
    %1030 = vmatprep.mubr.bf16.mxu0 %v186
    %1031 = vmatmul.mubr.bf16.gmra.mrb[0].mxu0 %v185
    %v1032 = vpop.f32.mrb[0].mxu0
    %v1033 = vadd.f32 %v920, %v1032
    %v1034 = vpop.f32.mrb[0].mxu0
    %v1035 = vadd.f32 %v922, %v1034
    %v1036 = vpop.f32.mrb[0].mxu0
    %v1037 = vadd.f32 %v924, %v1036
    %v1038 = vpop.f32.mrb[0].mxu0
    %v1039 = vadd.f32 %v926, %v1038
    %1040 = vdwg.mxu0
    %1041 = vmatprep.subr.bf16.mxu0 %v659
    %1042 = vmatpush1.bf16.msra.mxu0 %v658
    %1043 = vmatprep.subr.bf16.mxu0 %v661
    %1044 = vmatpush1.bf16.msra.mxu0 %v660
    %1045 = vmatprep.subr.bf16.mxu0 %v663
    %1046 = vmatpush1.bf16.msra.mxu0 %v662
    %1047 = vmatprep.subr.bf16.mxu0 %v665
    %1048 = vmatpush1.bf16.msra.mxu0 %v664
    %1049 = vmatprep.subr.bf16.mxu0 %v667
    %1050 = vmatpush1.bf16.msra.mxu0 %v666
    %1051 = vmatprep.subr.bf16.mxu0 %v669
    %1052 = vmatpush1.bf16.msra.mxu0 %v668
    %1053 = vmatprep.subr.bf16.mxu0 %v671
    %1054 = vmatpush1.bf16.msra.mxu0 %v670
    %1055 = vmatprep.subr.bf16.mxu0 %v673
    %1056 = vmatpush1.bf16.msra.mxu0 %v672
    %1057 = vmatprep.subr.bf16.mxu0 %v675
    %1058 = vmatpush1.bf16.msra.mxu0 %v674
    %1059 = vmatprep.subr.bf16.mxu0 %v677
    %1060 = vmatpush1.bf16.msra.mxu0 %v676
    %1061 = vmatprep.subr.bf16.mxu0 %v679
    %1062 = vmatpush1.bf16.msra.mxu0 %v678
    %1063 = vmatprep.subr.bf16.mxu0 %v681
    %1064 = vmatpush1.bf16.msra.mxu0 %v680
    %1065 = vmatprep.subr.bf16.mxu0 %v683
    %1066 = vmatpush1.bf16.msra.mxu0 %v682
    %1067 = vmatprep.subr.bf16.mxu0 %v685
    %1068 = vmatpush1.bf16.msra.mxu0 %v684
    %1069 = vmatprep.subr.bf16.mxu0 %v687
    %1070 = vmatpush1.bf16.msra.mxu0 %v686
    %1071 = vmatprep.subr.bf16.mxu0 %v689
    %1072 = vmatpush1.bf16.msra.mxu0 %v688
    %1073 = vmatprep.mubr.bf16.mxu0 %v139
    %1074 = vmatmul.mubr.bf16.gmra.mrb[0].mxu0 %v138
    %v1075 = vpop.f32.mrb[0].mxu0
    %v1076 = vadd.f32 %v963, %v1075
    %v1077 = vpop.f32.mrb[0].mxu0
    %v1078 = vadd.f32 %v965, %v1077
    %v1079 = vpop.f32.mrb[0].mxu0
    %v1080 = vadd.f32 %v967, %v1079
    %v1081 = vpop.f32.mrb[0].mxu0
    %v1082 = vadd.f32 %v969, %v1081
    %1083 = vmatprep.mubr.bf16.mxu0 %v146
    %1084 = vmatmul.mubr.bf16.gmra.mrb[0].mxu0 %v145
    %v1085 = vpop.f32.mrb[0].mxu0
    %v1086 = vadd.f32 %v973, %v1085
    %v1087 = vpop.f32.mrb[0].mxu0
    %v1088 = vadd.f32 %v975, %v1087
    %v1089 = vpop.f32.mrb[0].mxu0
    %v1090 = vadd.f32 %v977, %v1089
    %v1091 = vpop.f32.mrb[0].mxu0
    %v1092 = vadd.f32 %v979, %v1091
    %1093 = vmatprep.mubr.bf16.mxu0 %v153
    %1094 = vmatmul.mubr.bf16.gmra.mrb[0].mxu0 %v152
    %v1095 = vpop.f32.mrb[0].mxu0
    %v1096 = vadd.f32 %v983, %v1095
    %v1097 = vpop.f32.mrb[0].mxu0
    %v1098 = vadd.f32 %v985, %v1097
    %v1099 = vpop.f32.mrb[0].mxu0
    %v1100 = vadd.f32 %v987, %v1099
    %v1101 = vpop.f32.mrb[0].mxu0
    %v1102 = vadd.f32 %v989, %v1101
    %1103 = vmatprep.mubr.bf16.mxu0 %v160
    %1104 = vmatmul.mubr.bf16.gmra.mrb[0].mxu0 %v159
    %v1105 = vpop.f32.mrb[0].mxu0
    %v1106 = vadd.f32 %v993, %v1105
    %v1107 = vpop.f32.mrb[0].mxu0
    %v1108 = vadd.f32 %v995, %v1107
    %v1109 = vpop.f32.mrb[0].mxu0
    %v1110 = vadd.f32 %v997, %v1109
    %v1111 = vpop.f32.mrb[0].mxu0
    %v1112 = vadd.f32 %v999, %v1111
    %1113 = vmatprep.mubr.bf16.mxu0 %v167
    %1114 = vmatmul.mubr.bf16.gmra.mrb[0].mxu0 %v166
    %v1115 = vpop.f32.mrb[0].mxu0
    %v1116 = vadd.f32 %v1003, %v1115
    %v1117 = vpop.f32.mrb[0].mxu0
    %v1118 = vadd.f32 %v1005, %v1117
    %v1119 = vpop.f32.mrb[0].mxu0
    %v1120 = vadd.f32 %v1007, %v1119
    %v1121 = vpop.f32.mrb[0].mxu0
    %v1122 = vadd.f32 %v1009, %v1121
    %1123 = vmatprep.mubr.bf16.mxu0 %v174
    %1124 = vmatmul.mubr.bf16.gmra.mrb[0].mxu0 %v173
    %v1125 = vpop.f32.mrb[0].mxu0
    %v1126 = vadd.f32 %v1013, %v1125
    %v1127 = vpop.f32.mrb[0].mxu0
    %v1128 = vadd.f32 %v1015, %v1127
    %v1129 = vpop.f32.mrb[0].mxu0
    %v1130 = vadd.f32 %v1017, %v1129
    %v1131 = vpop.f32.mrb[0].mxu0
    %v1132 = vadd.f32 %v1019, %v1131
    %1133 = vmatprep.mubr.bf16.mxu0 %v181
    %1134 = vmatmul.mubr.bf16.gmra.mrb[0].mxu0 %v180
    %v1135 = vpop.f32.mrb[0].mxu0
    %v1136 = vadd.f32 %v1023, %v1135
    %v1137 = vpop.f32.mrb[0].mxu0
    %v1138 = vadd.f32 %v1025, %v1137
    %v1139 = vpop.f32.mrb[0].mxu0
    %v1140 = vadd.f32 %v1027, %v1139
    %v1141 = vpop.f32.mrb[0].mxu0
    %v1142 = vadd.f32 %v1029, %v1141
    %1143 = vmatprep.mubr.bf16.mxu0 %v188
    %1144 = vmatmul.mubr.bf16.gmra.mrb[0].mxu0 %v187
    %v1145 = vpop.f32.mrb[0].mxu0
    %v1146 = vadd.f32 %v1033, %v1145
    %v1147 = vpop.f32.mrb[0].mxu0
    %v1148 = vadd.f32 %v1035, %v1147
    %v1149 = vpop.f32.mrb[0].mxu0
    %v1150 = vadd.f32 %v1037, %v1149
    %v1151 = vpop.f32.mrb[0].mxu0
    %v1152 = vadd.f32 %v1039, %v1151
    %1153 = vdwg.mxu0
    %1154 = vmatprep.subr.bf16.mxu0 %v691
    %1155 = vmatpush1.bf16.msra.mxu0 %v690
    %1156 = vmatprep.subr.bf16.mxu0 0
    %1157 = vmatpush1.bf16.msra.mxu0 0
    %1158 = vmatprep.subr.bf16.mxu0 0
    %1159 = vmatpush1.bf16.msra.mxu0 0
    %1160 = vmatprep.subr.bf16.mxu0 0
    %1161 = vmatpush1.bf16.msra.mxu0 0
    %1162 = vmatprep.subr.bf16.mxu0 0
    %1163 = vmatpush1.bf16.msra.mxu0 0
    %1164 = vmatprep.subr.bf16.mxu0 0
    %1165 = vmatpush1.bf16.msra.mxu0 0
    %1166 = vmatprep.subr.bf16.mxu0 0
    %1167 = vmatpush1.bf16.msra.mxu0 0
    %1168 = vmatprep.subr.bf16.mxu0 0
    %1169 = vmatpush1.bf16.msra.mxu0 0
    %1170 = vmatprep.subr.bf16.mxu0 0
    %1171 = vmatpush1.bf16.msra.mxu0 0
    %1172 = vmatprep.subr.bf16.mxu0 0
    %1173 = vmatpush1.bf16.msra.mxu0 0
    %1174 = vmatprep.subr.bf16.mxu0 0
    %1175 = vmatpush1.bf16.msra.mxu0 0
    %1176 = vmatprep.subr.bf16.mxu0 0
    %1177 = vmatpush1.bf16.msra.mxu0 0
    %1178 = vmatprep.subr.bf16.mxu0 0
    %1179 = vmatpush1.bf16.msra.mxu0 0
    %1180 = vmatprep.subr.bf16.mxu0 0
    %1181 = vmatpush1.bf16.msra.mxu0 0
    %1182 = vmatprep.subr.bf16.mxu0 0
    %1183 = vmatpush1.bf16.msra.mxu0 0
    %1184 = vmatprep.subr.bf16.mxu0 0
    %1185 = vmatpush1.bf16.msra.mxu0 0
    %1186 = vmatprep.mubr.bf16.mxu0 0
    %1187 = vmatmul.mubr.bf16.gmra.mrb[0].mxu0 %v792
    %v1188 = vpop.f32.mrb[0].mxu0
    %v1189 = vadd.f32 %v1076, %v1188
    %v1190 = vpop.f32.mrb[0].mxu0
    %v1191 = vadd.f32 %v1078, %v1190
    %v1192 = vpop.f32.mrb[0].mxu0
    %v1193 = vadd.f32 %v1080, %v1192
    %v1194 = vpop.f32.mrb[0].mxu0
    %v1195 = vadd.f32 %v1082, %v1194
    %1196 = vmatprep.mubr.bf16.mxu0 0
    %1197 = vmatmul.mubr.bf16.gmra.mrb[0].mxu0 %v795
    %v1198 = vpop.f32.mrb[0].mxu0
    %v1199 = vadd.f32 %v1086, %v1198
    %v1200 = vpop.f32.mrb[0].mxu0
    %v1201 = vadd.f32 %v1088, %v1200
    %v1202 = vpop.f32.mrb[0].mxu0
    %v1203 = vadd.f32 %v1090, %v1202
    %v1204 = vpop.f32.mrb[0].mxu0
    %v1205 = vadd.f32 %v1092, %v1204
    %1206 = vmatprep.mubr.bf16.mxu0 0
    %1207 = vmatmul.mubr.bf16.gmra.mrb[0].mxu0 %v798
    %v1208 = vpop.f32.mrb[0].mxu0
    %v1209 = vadd.f32 %v1096, %v1208
    %v1210 = vpop.f32.mrb[0].mxu0
    %v1211 = vadd.f32 %v1098, %v1210
    %v1212 = vpop.f32.mrb[0].mxu0
    %v1213 = vadd.f32 %v1100, %v1212
    %v1214 = vpop.f32.mrb[0].mxu0
    %v1215 = vadd.f32 %v1102, %v1214
    %1216 = vmatprep.mubr.bf16.mxu0 0
    %1217 = vmatmul.mubr.bf16.gmra.mrb[0].mxu0 %v801
    %v1218 = vpop.f32.mrb[0].mxu0
    %v1219 = vadd.f32 %v1106, %v1218
    %v1220 = vpop.f32.mrb[0].mxu0
    %v1221 = vadd.f32 %v1108, %v1220
    %v1222 = vpop.f32.mrb[0].mxu0
    %v1223 = vadd.f32 %v1110, %v1222
    %v1224 = vpop.f32.mrb[0].mxu0
    %v1225 = vadd.f32 %v1112, %v1224
    %1226 = vmatprep.mubr.bf16.mxu0 0
    %1227 = vmatmul.mubr.bf16.gmra.mrb[0].mxu0 %v804
    %v1228 = vpop.f32.mrb[0].mxu0
    %v1229 = vadd.f32 %v1116, %v1228
    %v1230 = vpop.f32.mrb[0].mxu0
    %v1231 = vadd.f32 %v1118, %v1230
    %v1232 = vpop.f32.mrb[0].mxu0
    %v1233 = vadd.f32 %v1120, %v1232
    %v1234 = vpop.f32.mrb[0].mxu0
    %v1235 = vadd.f32 %v1122, %v1234
    %1236 = vmatprep.mubr.bf16.mxu0 0
    %1237 = vmatmul.mubr.bf16.gmra.mrb[0].mxu0 %v807
    %v1238 = vpop.f32.mrb[0].mxu0
    %v1239 = vadd.f32 %v1126, %v1238
    %v1240 = vpop.f32.mrb[0].mxu0
    %v1241 = vadd.f32 %v1128, %v1240
    %v1242 = vpop.f32.mrb[0].mxu0
    %v1243 = vadd.f32 %v1130, %v1242
    %v1244 = vpop.f32.mrb[0].mxu0
    %v1245 = vadd.f32 %v1132, %v1244
    %1246 = vmatprep.mubr.bf16.mxu0 0
    %1247 = vmatmul.mubr.bf16.gmra.mrb[0].mxu0 %v810
    %v1248 = vpop.f32.mrb[0].mxu0
    %v1249 = vadd.f32 %v1136, %v1248
    %v1250 = vpop.f32.mrb[0].mxu0
    %v1251 = vadd.f32 %v1138, %v1250
    %v1252 = vpop.f32.mrb[0].mxu0
    %v1253 = vadd.f32 %v1140, %v1252
    %v1254 = vpop.f32.mrb[0].mxu0
    %v1255 = vadd.f32 %v1142, %v1254
    %1256 = vmatprep.mubr.bf16.mxu0 0
    %1257 = vmatmul.mubr.bf16.gmra.mrb[0].mxu0 %v813
    %v1258 = vpop.f32.mrb[0].mxu0
    %v1259 = vadd.f32 %v1146, %v1258
    %v1260 = vpop.f32.mrb[0].mxu0
    %v1261 = vadd.f32 %v1148, %v1260
    %v1262 = vpop.f32.mrb[0].mxu0
    %v1263 = vadd.f32 %v1150, %v1262
    %v1264 = vpop.f32.mrb[0].mxu0
    %v1265 = vadd.f32 %v1152, %v1264
    %1266 = vdwg.mxu0
    %v1267 = vmax.f32 %v1189, 0.0
    %v1268 = vmax.f32 %v1191, 0.0
    %v1269 = vmax.f32 %v1193, 0.0
    %v1270 = vmax.f32 %v1195, 0.0
    %v1271 = vmax.f32 %v1199, 0.0
    %v1272 = vmax.f32 %v1201, 0.0
    %v1273 = vmax.f32 %v1203, 0.0
    %v1274 = vmax.f32 %v1205, 0.0
    %v1275 = vmax.f32 %v1209, 0.0
    %v1276 = vmax.f32 %v1211, 0.0
    %v1277 = vmax.f32 %v1213, 0.0
    %v1278 = vmax.f32 %v1215, 0.0
    %v1279 = vmax.f32 %v1219, 0.0
    %v1280 = vmax.f32 %v1221, 0.0
    %v1281 = vmax.f32 %v1223, 0.0
    %v1282 = vmax.f32 %v1225, 0.0
    %v1283 = vmax.f32 %v1229, 0.0
    %v1284 = vmax.f32 %v1231, 0.0
    %v1285 = vmax.f32 %v1233, 0.0
    %v1286 = vmax.f32 %v1235, 0.0
    %v1287 = vmax.f32 %v1239, 0.0
    %v1288 = vmax.f32 %v1241, 0.0
    %v1289 = vmax.f32 %v1243, 0.0
    %v1290 = vmax.f32 %v1245, 0.0
    %v1291 = vmax.f32 %v1249, 0.0
    %v1292 = vmax.f32 %v1251, 0.0
    %v1293 = vmax.f32 %v1253, 0.0
    %v1294 = vmax.f32 %v1255, 0.0
    %v1295 = vmax.f32 %v1259, 0.0
    %v1296 = vmax.f32 %v1261, 0.0
    %v1297 = vmax.f32 %v1263, 0.0
    %v1298 = vmax.f32 %v1265, 0.0
    %v1299 = vpack.c.bf16 %v1269, %v1267
    %v1300 = vpack.c.bf16 %v1270, %v1268
    %v1301 = vpack.c.bf16 %v1273, %v1271
    %v1302 = vpack.c.bf16 %v1274, %v1272
    %v1303 = vpack.c.bf16 %v1277, %v1275
    %v1304 = vpack.c.bf16 %v1278, %v1276
    %v1305 = vpack.c.bf16 %v1281, %v1279
    %v1306 = vpack.c.bf16 %v1282, %v1280
    %v1307 = vpack.c.bf16 %v1285, %v1283
    %v1308 = vpack.c.bf16 %v1286, %v1284
    %v1309 = vpack.c.bf16 %v1289, %v1287
    %v1310 = vpack.c.bf16 %v1290, %v1288
    %v1311 = vpack.c.bf16 %v1293, %v1291
    %v1312 = vpack.c.bf16 %v1294, %v1292
    %v1313 = vpack.c.bf16 %v1297, %v1295
    %v1314 = vpack.c.bf16 %v1298, %v1296
    %v1315 = vld [vmem:[%s3] sm:$0xf]
    %v1316 = vld [vmem:[%s3 + $0x4] sm:$0xf]
    %v1317 = vld [vmem:[%s3 + $0x8] sm:$0xf]
    %v1318 = vld [vmem:[%s3 + $0xc] sm:$0xf]
    %v1319 = vld [vmem:[%s3 + $0x10] sm:$0xf]
    %v1320 = vld [vmem:[%s3 + $0x14] sm:$0xf]
    %v1321 = vld [vmem:[%s3 + $0x18] sm:$0xf]
    %v1322 = vld [vmem:[%s3 + $0x1c] sm:$0xf]
    %v1323 = vld [vmem:[%s3 + $0x20] sm:$0xf]
    %v1324 = vld [vmem:[%s3 + $0x24] sm:$0xf]
    %v1325 = vld [vmem:[%s3 + $0x28] sm:$0xf]
    %v1326 = vld [vmem:[%s3 + $0x2c] sm:$0xf]
    %v1327 = vld [vmem:[%s3 + $0x30] sm:$0xf]
    %v1328 = vld [vmem:[%s3 + $0x34] sm:$0xf]
    %v1329 = vld [vmem:[%s3 + $0x38] sm:$0xf]
    %v1330 = vld [vmem:[%s3 + $0x3c] sm:$0xf]
    %v1331 = vld [vmem:[%s3 + $0x40] sm:$0xf]
    %v1332 = vld [vmem:[%s3 + $0x44] sm:$0xf]
    %v1333 = vld [vmem:[%s3 + $0x48] sm:$0xf]
    %v1334 = vld [vmem:[%s3 + $0x4c] sm:$0xf]
    %v1335 = vld [vmem:[%s3 + $0x50] sm:$0xf]
    %v1336 = vld [vmem:[%s3 + $0x54] sm:$0xf]
    %v1337 = vld [vmem:[%s3 + $0x58] sm:$0xf]
    %v1338 = vld [vmem:[%s3 + $0x5c] sm:$0xf]
    %v1339 = vld [vmem:[%s3 + $0x60] sm:$0xf]
    %v1340 = vld [vmem:[%s3 + $0x64] sm:$0xf]
    %v1341 = vld [vmem:[%s3 + $0x68] sm:$0xf]
    %v1342 = vld [vmem:[%s3 + $0x6c] sm:$0xf]
    %v1343 = vld [vmem:[%s3 + $0x70] sm:$0xf]
    %v1344 = vld [vmem:[%s3 + $0x74] sm:$0xf]
    %v1345 = vld [vmem:[%s3 + $0x78] sm:$0xf]
    %v1346 = vld [vmem:[%s3 + $0x7c] sm:$0xf]
    %v1347 = vld [vmem:[%s4] sm:$0x1]
    %v1349 = vlaneseq
    %v1350 = vshrl.u32 %v1349, 7
    %v1351 = vsub.s32 0, %v1350
    %v1352 = vrot.slane %v1347, %v1351
    %v1386 = vunpack.c.l.b16 %v1315
    %v1387 = vunpack.c.l.b16 %v1316
    %v1388 = vunpack.c.l.b16 %v1317
    %v1389 = vunpack.c.l.b16 %v1318
    %v1390 = vunpack.c.l.b16 %v1319
    %v1391 = vunpack.c.l.b16 %v1320
    %v1392 = vunpack.c.l.b16 %v1321
    %v1393 = vunpack.c.l.b16 %v1322
    %v1394 = vunpack.c.l.b16 %v1323
    %v1395 = vunpack.c.l.b16 %v1324
    %v1396 = vunpack.c.l.b16 %v1325
    %v1397 = vunpack.c.l.b16 %v1326
    %v1398 = vunpack.c.l.b16 %v1327
    %v1399 = vunpack.c.l.b16 %v1328
    %v1400 = vunpack.c.l.b16 %v1329
    %v1401 = vunpack.c.l.b16 %v1330
    %v1402 = vunpack.c.l.b16 %v1331
    %v1403 = vunpack.c.l.b16 %v1332
    %v1404 = vunpack.c.l.b16 %v1333
    %v1405 = vunpack.c.l.b16 %v1334
    %v1406 = vunpack.c.l.b16 %v1335
    %v1407 = vunpack.c.l.b16 %v1336
    %v1408 = vunpack.c.l.b16 %v1337
    %v1409 = vunpack.c.l.b16 %v1338
    %v1410 = vunpack.c.l.b16 %v1339
    %v1411 = vunpack.c.l.b16 %v1340
    %v1412 = vunpack.c.l.b16 %v1341
    %v1413 = vunpack.c.l.b16 %v1342
    %v1414 = vunpack.c.l.b16 %v1343
    %v1415 = vunpack.c.l.b16 %v1344
    %v1416 = vunpack.c.l.b16 %v1345
    %v1417 = vunpack.c.l.b16 %v1346
    %v1418 = vpack.c.b16 %v1387, %v1386
    %v1419 = vpack.c.b16 %v1389, %v1388
    %v1420 = vpack.c.b16 %v1391, %v1390
    %v1421 = vpack.c.b16 %v1393, %v1392
    %v1422 = vpack.c.b16 %v1395, %v1394
    %v1423 = vpack.c.b16 %v1397, %v1396
    %v1424 = vpack.c.b16 %v1399, %v1398
    %v1425 = vpack.c.b16 %v1401, %v1400
    %v1426 = vpack.c.b16 %v1403, %v1402
    %v1427 = vpack.c.b16 %v1405, %v1404
    %v1428 = vpack.c.b16 %v1407, %v1406
    %v1429 = vpack.c.b16 %v1409, %v1408
    %v1430 = vpack.c.b16 %v1411, %v1410
    %v1431 = vpack.c.b16 %v1413, %v1412
    %v1432 = vpack.c.b16 %v1415, %v1414
    %v1433 = vpack.c.b16 %v1417, %v1416
    %1450 = vmatprep.subr.bf16.mxu0 0
    %1451 = vmatpush1.bf16.msra.mxu0 %v1418
    %1452 = vmatprep.subr.bf16.mxu0 0
    %1453 = vmatpush1.bf16.msra.mxu0 %v1419
    %1454 = vmatprep.subr.bf16.mxu0 0
    %1455 = vmatpush1.bf16.msra.mxu0 %v1420
    %1456 = vmatprep.subr.bf16.mxu0 0
    %1457 = vmatpush1.bf16.msra.mxu0 %v1421
    %1458 = vmatprep.subr.bf16.mxu0 0
    %1459 = vmatpush1.bf16.msra.mxu0 %v1422
    %1460 = vmatprep.subr.bf16.mxu0 0
    %1461 = vmatpush1.bf16.msra.mxu0 %v1423
    %1462 = vmatprep.subr.bf16.mxu0 0
    %1463 = vmatpush1.bf16.msra.mxu0 %v1424
    %1464 = vmatprep.subr.bf16.mxu0 0
    %1465 = vmatpush1.bf16.msra.mxu0 %v1425
    %1466 = vmatprep.subr.bf16.mxu0 0
    %1467 = vmatpush1.bf16.msra.mxu0 %v1426
    %1468 = vmatprep.subr.bf16.mxu0 0
    %1469 = vmatpush1.bf16.msra.mxu0 %v1427
    %1470 = vmatprep.subr.bf16.mxu0 0
    %1471 = vmatpush1.bf16.msra.mxu0 %v1428
    %1472 = vmatprep.subr.bf16.mxu0 0
    %1473 = vmatpush1.bf16.msra.mxu0 %v1429
    %1474 = vmatprep.subr.bf16.mxu0 0
    %1475 = vmatpush1.bf16.msra.mxu0 %v1430
    %1476 = vmatprep.subr.bf16.mxu0 0
    %1477 = vmatpush1.bf16.msra.mxu0 %v1431
    %1478 = vmatprep.subr.bf16.mxu0 0
    %1479 = vmatpush1.bf16.msra.mxu0 %v1432
    %1480 = vmatprep.subr.bf16.mxu0 0
    %1481 = vmatpush1.bf16.msra.mxu0 %v1433
    %1482 = vmatprep.mubr.bf16.mxu0 %v1300
    %1483 = vmatmul.mubr.bf16.gmra.mrb[0].mxu0 %v1299
    %v1484 = vpop.f32.mrb[0].mxu0
    %v1485 = vadd.f32 %v1352, %v1484
    %v1486 = vpop.f32.mrb[0].mxu0
    %v1487 = vpop.f32.mrb[0].mxu0
    %v1488 = vadd.f32 %v1352, %v1487
    %v1489 = vpop.f32.mrb[0].mxu0
    %1490 = vmatprep.mubr.bf16.mxu0 %v1302
    %1491 = vmatmul.mubr.bf16.gmra.mrb[0].mxu0 %v1301
    %v1492 = vpop.f32.mrb[0].mxu0
    %v1493 = vadd.f32 %v1352, %v1492
    %v1494 = vpop.f32.mrb[0].mxu0
    %v1495 = vpop.f32.mrb[0].mxu0
    %v1496 = vadd.f32 %v1352, %v1495
    %v1497 = vpop.f32.mrb[0].mxu0
    %1498 = vmatprep.mubr.bf16.mxu0 %v1304
    %1499 = vmatmul.mubr.bf16.gmra.mrb[0].mxu0 %v1303
    %v1500 = vpop.f32.mrb[0].mxu0
    %v1501 = vadd.f32 %v1352, %v1500
    %v1502 = vpop.f32.mrb[0].mxu0
    %v1503 = vpop.f32.mrb[0].mxu0
    %v1504 = vadd.f32 %v1352, %v1503
    %v1505 = vpop.f32.mrb[0].mxu0
    %1506 = vmatprep.mubr.bf16.mxu0 %v1306
    %1507 = vmatmul.mubr.bf16.gmra.mrb[0].mxu0 %v1305
    %v1508 = vpop.f32.mrb[0].mxu0
    %v1509 = vadd.f32 %v1352, %v1508
    %v1510 = vpop.f32.mrb[0].mxu0
    %v1511 = vpop.f32.mrb[0].mxu0
    %v1512 = vadd.f32 %v1352, %v1511
    %v1513 = vpop.f32.mrb[0].mxu0
    %1514 = vmatprep.mubr.bf16.mxu0 %v1308
    %1515 = vmatmul.mubr.bf16.gmra.mrb[0].mxu0 %v1307
    %v1516 = vpop.f32.mrb[0].mxu0
    %v1517 = vadd.f32 %v1352, %v1516
    %v1518 = vpop.f32.mrb[0].mxu0
    %v1519 = vpop.f32.mrb[0].mxu0
    %v1520 = vadd.f32 %v1352, %v1519
    %v1521 = vpop.f32.mrb[0].mxu0
    %1522 = vmatprep.mubr.bf16.mxu0 %v1310
    %1523 = vmatmul.mubr.bf16.gmra.mrb[0].mxu0 %v1309
    %v1524 = vpop.f32.mrb[0].mxu0
    %v1525 = vadd.f32 %v1352, %v1524
    %v1526 = vpop.f32.mrb[0].mxu0
    %v1527 = vpop.f32.mrb[0].mxu0
    %v1528 = vadd.f32 %v1352, %v1527
    %v1529 = vpop.f32.mrb[0].mxu0
    %1530 = vmatprep.mubr.bf16.mxu0 %v1312
    %1531 = vmatmul.mubr.bf16.gmra.mrb[0].mxu0 %v1311
    %v1532 = vpop.f32.mrb[0].mxu0
    %v1533 = vadd.f32 %v1352, %v1532
    %v1534 = vpop.f32.mrb[0].mxu0
    %v1535 = vpop.f32.mrb[0].mxu0
    %v1536 = vadd.f32 %v1352, %v1535
    %v1537 = vpop.f32.mrb[0].mxu0
    %1538 = vmatprep.mubr.bf16.mxu0 %v1314
    %1539 = vmatmul.mubr.bf16.gmra.mrb[0].mxu0 %v1313
    %v1540 = vpop.f32.mrb[0].mxu0
    %v1541 = vadd.f32 %v1352, %v1540
    %v1542 = vpop.f32.mrb[0].mxu0
    %v1543 = vpop.f32.mrb[0].mxu0
    %v1544 = vadd.f32 %v1352, %v1543
    %v1545 = vpop.f32.mrb[0].mxu0
    %1546 = vdwg.mxu0
    %v1547 = vpack.c.bf16 %v1488, %v1485
    %v1548 = vpack.c.bf16 %v1496, %v1493
    %v1549 = vpack.c.bf16 %v1504, %v1501
    %v1550 = vpack.c.bf16 %v1512, %v1509
    %v1551 = vpack.c.bf16 %v1520, %v1517
    %v1552 = vpack.c.bf16 %v1528, %v1525
    %v1553 = vpack.c.bf16 %v1536, %v1533
    %v1554 = vpack.c.bf16 %v1544, %v1541
    %v1563 = vunpack.c.l.b16 %v1547
    %v1564 = vunpack.c.h.b16 %v1547
    %v1565 = vunpack.c.l.b16 %v1548
    %v1566 = vunpack.c.h.b16 %v1548
    %v1567 = vunpack.c.l.b16 %v1549
    %v1568 = vunpack.c.h.b16 %v1549
    %v1569 = vunpack.c.l.b16 %v1550
    %v1570 = vunpack.c.h.b16 %v1550
    %v1571 = vunpack.c.l.b16 %v1551
    %v1572 = vunpack.c.h.b16 %v1551
    %v1573 = vunpack.c.l.b16 %v1552
    %v1574 = vunpack.c.h.b16 %v1552
    %v1575 = vunpack.c.l.b16 %v1553
    %v1576 = vunpack.c.h.b16 %v1553
    %v1577 = vunpack.c.l.b16 %v1554
    %v1578 = vunpack.c.h.b16 %v1554
    %v1579 = vpack.c.b16 %v1563, %v1563
    %v1580 = vpack.c.b16 %v1564, %v1564
    %v1581 = vpack.c.b16 %v1565, %v1565
    %v1582 = vpack.c.b16 %v1566, %v1566
    %v1583 = vpack.c.b16 %v1567, %v1567
    %v1584 = vpack.c.b16 %v1568, %v1568
    %v1585 = vpack.c.b16 %v1569, %v1569
    %v1586 = vpack.c.b16 %v1570, %v1570
    %v1587 = vpack.c.b16 %v1571, %v1571
    %v1588 = vpack.c.b16 %v1572, %v1572
    %v1589 = vpack.c.b16 %v1573, %v1573
    %v1590 = vpack.c.b16 %v1574, %v1574
    %v1591 = vpack.c.b16 %v1575, %v1575
    %v1592 = vpack.c.b16 %v1576, %v1576
    %v1593 = vpack.c.b16 %v1577, %v1577
    %v1594 = vpack.c.b16 %v1578, %v1578
    %1611 = vst [vmem:[#allocation2] sm:$0xf] %v1579
    %1612 = vst [vmem:[#allocation2 + $0x4] sm:$0xf] %v1580
    %1613 = vst [vmem:[#allocation2 + $0x8] sm:$0xf] %v1581
    %1614 = vst [vmem:[#allocation2 + $0xc] sm:$0xf] %v1582
    %1615 = vst [vmem:[#allocation2 + $0x10] sm:$0xf] %v1583
    %1616 = vst [vmem:[#allocation2 + $0x14] sm:$0xf] %v1584
    %1617 = vst [vmem:[#allocation2 + $0x18] sm:$0xf] %v1585
    %1618 = vst [vmem:[#allocation2 + $0x1c] sm:$0xf] %v1586
    %1619 = vst [vmem:[#allocation2 + $0x20] sm:$0xf] %v1587
    %1620 = vst [vmem:[#allocation2 + $0x24] sm:$0xf] %v1588
    %1621 = vst [vmem:[#allocation2 + $0x28] sm:$0xf] %v1589
    %1622 = vst [vmem:[#allocation2 + $0x2c] sm:$0xf] %v1590
    %1623 = vst [vmem:[#allocation2 + $0x30] sm:$0xf] %v1591
    %1624 = vst [vmem:[#allocation2 + $0x34] sm:$0xf] %v1592
    %1625 = vst [vmem:[#allocation2 + $0x38] sm:$0xf] %v1593
    %1626 = vst [vmem:[#allocation2 + $0x3c] sm:$0xf] %v1594
    // Predicated region
    $region22: #{tpu_custom_call.1} parent=1 // pred_check
      _
    $region23: #{tpu_custom_call.1} parent=1 // pred_check_branch
      %1628 = sbr.rel (0) target = $region25
    $region24: #{tpu_custom_call.1} parent=1 // pred_region
      %s1630 = ssub.s32 1024, 1024
      %1631 = vsyncadd [#allocation3], %s1630
      %s1632 = sshll.u32 [#allocation2], 4
      %s1633 = int_to_ptr.vmem [resolvable:$true] %s1632
      %1638 = dma.vmem_to_hbm [thread:$0]  %s1633, 1024, %s5, [#allocation3], 64, 64, 4
    $region25: #{tpu_custom_call.1} parent=1 // pred_fallthru
      _
    // Predicated region
    $region26: #{tpu_custom_call.1} parent=1 // pred_check
      _
    $region27: #{tpu_custom_call.1} parent=1 // pred_check_branch
      %1640 = sbr.rel (0) target = $region29
    $region28: #{tpu_custom_call.1} parent=1 // pred_region
      %1641 = dma.done [#allocation3], 1024
    $region29: #{tpu_custom_call.1} parent=1 // pred_fallthru
      _
    %1642 = vsyncpa [#allocation3], 1

</llo_original>
